<compile_context>
chip_gen: v5e
topology: v5e:2x2
jax: 0.10.0
libtpu: 0.0.40
codegen_flags: <defaults>
</compile_context>

<pallas_src>
import functools

import jax
import jax.numpy as jnp
from jax import lax
from jax.experimental import pallas as pl
from jax.experimental.pallas import tpu as pltpu


def _round_up(x, m):
    return ((x + m - 1) // m) * m


def _fused_forward_kernel(
    bp,                      # padded per-view batch size (static)
    img_ref,                 # (2*bp, F)   f32  — both views, flattened NHWC
    wb_ref, bb_ref,          # (F, 512) bf16, (1, 512) f32  — backbone stand-in
    wlg_ref, blg_ref,        # (512, 256) bf16, (1, 256) f32 — lgbase
    wg0_ref, wg1_ref,        # (2, 256) f32 each — fused mlpfusion gate weights (torch (out,in))
    bg_ref,                  # (1, 2) f32  — [fc1.bias, fc2.bias]
    wl2_ref, bl2_ref,        # (2, 256) f32 (pre-scaled by 1/C), (1, 2) f32 — lg2
    out_ref,                 # (bp, 2) f32 — log-probabilities
):
    dn = (((1,), (1,)), ((), ()))  # contract last dims (rhs kept in torch (out,in) layout)

    # ---- shared backbone stand-in: ONE (2B, F) @ (F, 512) bf16 matmul + ReLU ----
    img_bf = img_ref[...].astype(jnp.bfloat16)         # in-kernel VPU cast (no wrapper HBM pass)
    feat = jnp.dot(img_bf, wb_ref[...], preferred_element_type=jnp.float32)
    feat = jnp.maximum(feat + bb_ref[...], 0.0)        # (2*bp, 512)

    # ---- lgbase: Linear(512, 256), bf16 MXU path, still folded over views ----
    enc = jnp.dot(feat.astype(jnp.bfloat16), wlg_ref[...],
                  preferred_element_type=jnp.float32) + blg_ref[...]          # (2*bp, 256)

    enc0 = enc[:bp, :]                                  # view 0 (tile-aligned: bp % 8 == 0)
    enc1 = enc[bp:, :]                                  # view 1

    # ---- mlpfusion gates: fc1 & fc2 fused into two K-contractions ----
    gates = (lax.dot_general(enc0, wg0_ref[...], dn, preferred_element_type=jnp.float32)
             + lax.dot_general(enc1, wg1_ref[...], dn, preferred_element_type=jnp.float32)
             + bg_ref[...])                             # (bp, 2) = [gate1, gate2]
    w = pl.reciprocal(1.0 + jnp.exp(-gates), approx=True)   # sigmoid via EUP exp + rcp

    # ---- gated sum (the /C of the module is folded into wl2 by the wrapper) ----
    fused = enc0 * w[:, 0:1] + enc1 * w[:, 1:2]         # (bp, 256)

    # ---- lg2 head: Linear(256, 2) in torch (2, 256) layout + LogSoftmax ----
    logits = lax.dot_general(fused, wl2_ref[...], dn,
                             preferred_element_type=jnp.float32) + bl2_ref[...]  # (bp, 2)
    m = jnp.max(logits, axis=-1, keepdims=True)
    z = logits - m
    lse = jnp.log(jnp.sum(jnp.exp(z), axis=-1, keepdims=True))
    out_ref[...] = (z - lse).astype(out_ref.dtype)


def prepare_params(wb, bb, wlg, blg, wf1, bf1, wf2, bf2, wl2, bl2, channels):
    """One-time parameter preparation (call ONCE, not per forward):
       * bf16 casts of the two large weights (backbone stand-in + lgbase),
       * fuse the two mlpfusion gate Linears into per-view (2, 256) weights,
       * fold the `/ image.size(1)` divide into the lg2 weight."""
    enc_dim = wf1.shape[1] // 2
    wg0 = jnp.concatenate([wf1[:, :enc_dim], wf2[:, :enc_dim]], axis=0)   # (2, 256) — view 0
    wg1 = jnp.concatenate([wf1[:, enc_dim:], wf2[:, enc_dim:]], axis=0)   # (2, 256) — view 1
    bg = jnp.concatenate([bf1, bf2], axis=1)                              # (1, 2)
    return (wb.astype(jnp.bfloat16), bb,
            wlg.astype(jnp.bfloat16), blg,
            wg0, wg1, bg,
            wl2 * (1.0 / channels), bl2)


@jax.jit
def multimodel_sharebackbone_mlp_forward(img_vbf, params):
    """img_vbf: (V=2, B, F) f32, per-view flattened NHWC images."""
    (wb_bf, bb, wlg_bf, blg, wg0, wg1, bg, wl2s, bl2) = params
    V, B, F = img_vbf.shape
    assert V == 2, "mlpfusion produces exactly two gates -> two views required"
    FEAT = wb_bf.shape[1]
    ENC = wlg_bf.shape[1]
    NCLS = wl2s.shape[0]

    # Pad the per-view batch so the enc0/enc1 split lands on sublane-tile edges.
    Bp = max(8, _round_up(B, 8))
    if Bp != B:
        img_vbf = jnp.pad(img_vbf, ((0, 0), (0, Bp - B), (0, 0)))
    img_2d = img_vbf.reshape(V * Bp, F)   # views folded into the MXU M dim (f32, cast in-kernel)

    kernel = functools.partial(_fused_forward_kernel, Bp)

    flops = (2 * (V * Bp) * F * FEAT              # backbone stand-in matmul
             + 2 * (V * Bp) * FEAT * ENC          # lgbase
             + 2 * (2 * Bp * ENC * 2)             # two fused gate K-contractions
             + 2 * Bp * ENC * NCLS)               # lg2 head
    bytes_accessed = (img_2d.size * 4
                      + (wb_bf.size + wlg_bf.size) * 2
                      + (bb.size + blg.size + wg0.size + wg1.size + bg.size
                         + wl2s.size + bl2.size) * 4
                      + Bp * NCLS * 4)

    out_p = pl.pallas_call(
        kernel,
        out_shape=jax.ShapeDtypeStruct((Bp, NCLS), jnp.float32),
        compiler_params=pltpu.CompilerParams(vmem_limit_bytes=64 * 1024 * 1024),
        cost_estimate=pl.CostEstimate(
            flops=flops,
            transcendentals=5 * Bp,               # 2 sigmoid exps + 2 softmax exps + 1 log per row
            bytes_accessed=bytes_accessed,
        ),
    )(img_2d, wb_bf, bb, wlg_bf, blg, wg0, wg1, bg, wl2s, bl2)
    # TODO(synk): for realistic ResNet-sized F / large B this needs an M/K grid with an
    # f32 accumulator (pl.when init/finalize), per-generation VMEM budgeting (64 MiB on
    # v7x, 16 MiB scoped default on v5e) and a "parallel" axis to use v7x's second TC.
    return out_p[:B]


def reference_forward(img_vbf, wb, bb, wlg, blg, wf1, bf1, wf2, bf2, wl2, bl2, channels):
    """Pure-JAX reference (same bf16 casts on both large matmuls as the kernel)."""
    feats = jnp.einsum("vbf,fd->vbd",
                       img_vbf.astype(jnp.bfloat16), wb.astype(jnp.bfloat16),
                       preferred_element_type=jnp.float32)
    feats = jnp.maximum(feats + bb, 0.0)
    enc = jnp.einsum("vbd,de->vbe",
                     feats.astype(jnp.bfloat16), wlg.astype(jnp.bfloat16),
                     preferred_element_type=jnp.float32) + blg
    enc0, enc1 = enc[0], enc[1]
    xall = jnp.concatenate([enc0, enc1], axis=-1)
    w1 = jax.nn.sigmoid(xall @ wf1.T + bf1)
    w2 = jax.nn.sigmoid(xall @ wf2.T + bf2)
    fused = (enc0 * w1 + enc1 * w2) / channels
    logits = fused @ wl2.T + bl2
    return jax.nn.log_softmax(logits, axis=1)


if __name__ == "__main__":
    # Small shapes: V=2 paired views, batch=2, 3x16x16 images.
    V, B, C_in, H, W = 2, 2, 3, 16, 16
    FEAT = 512          # ResNet34 backbone feature dim (default backbone)
    ENC = 256           # lgbase out_features
    NCLS = 2            # lg2 classes
    F = H * W * C_in

    key = jax.random.PRNGKey(0)
    ks = jax.random.split(key, 11)

    # PyTorch-style NCHW input, converted to the kernel layout (V, B, H*W*C).
    img_nchw = jax.random.normal(ks[0], (V, B, C_in, H, W), dtype=jnp.float32)
    img_vbf = jnp.transpose(img_nchw, (0, 1, 3, 4, 2)).reshape(V, B, F)

    wb = jax.random.normal(ks[1], (F, FEAT), dtype=jnp.float32) * 0.02     # backbone stand-in
    bb = jax.random.normal(ks[2], (1, FEAT), dtype=jnp.float32) * 0.02
    wlg = jax.random.normal(ks[3], (FEAT, ENC), dtype=jnp.float32) * 0.02  # lgbase
    blg = jax.random.normal(ks[4], (1, ENC), dtype=jnp.float32) * 0.02
    wf1 = jax.random.normal(ks[5], (1, 2 * ENC), dtype=jnp.float32) * 0.05 # mlpfusion.fc1
    bf1 = jax.random.normal(ks[6], (1, 1), dtype=jnp.float32) * 0.05
    wf2 = jax.random.normal(ks[7], (1, 2 * ENC), dtype=jnp.float32) * 0.05 # mlpfusion.fc2
    bf2 = jax.random.normal(ks[8], (1, 1), dtype=jnp.float32) * 0.05
    wl2 = jax.random.normal(ks[9], (NCLS, ENC), dtype=jnp.float32) * 0.05  # lg2 Linear(256, 2)
    bl2 = jax.random.normal(ks[10], (1, NCLS), dtype=jnp.float32) * 0.05

    # Parameter prep (bf16 casts, gate fusion, 1/C folding) done ONCE, outside the hot path.
    params = prepare_params(wb, bb, wlg, blg, wf1, bf1, wf2, bf2, wl2, bl2, channels=C_in)
    params = jax.block_until_ready(params)

    out = multimodel_sharebackbone_mlp_forward(img_vbf, params)
    out = jax.block_until_ready(out)

    ref = reference_forward(img_vbf, wb, bb, wlg, blg, wf1, bf1, wf2, bf2, wl2, bl2, C_in)
    assert out.shape == (B, NCLS)
    assert jnp.allclose(out, ref, atol=5e-3, rtol=5e-3), (out, ref)

    print("KERNEL_OK")
</pallas_src>

<mosaic_0001>
module attributes {stable_mosaic.version = 11 : i64} {
  func.func @_fused_forward_kernel(%arg0: memref<16x768xf32, #tpu.memory_space<vmem>>, %arg1: memref<768x512xbf16, #tpu.memory_space<vmem>>, %arg2: memref<1x512xf32, #tpu.memory_space<vmem>>, %arg3: memref<512x256xbf16, #tpu.memory_space<vmem>>, %arg4: memref<1x256xf32, #tpu.memory_space<vmem>>, %arg5: memref<2x256xf32, #tpu.memory_space<vmem>>, %arg6: memref<2x256xf32, #tpu.memory_space<vmem>>, %arg7: memref<1x2xf32, #tpu.memory_space<vmem>>, %arg8: memref<2x256xf32, #tpu.memory_space<vmem>>, %arg9: memref<1x2xf32, #tpu.memory_space<vmem>>, %arg10: memref<8x2xf32, #tpu.memory_space<vmem>>) attributes {dimension_semantics = [], scalar_prefetch = 0 : i64, scratch_operands = 0 : i64, tpu.core_type = #tpu.core_type<tc>} {
    %c0 = arith.constant 0 : index
    %c0_0 = arith.constant 0 : index
    %0 = vector.load %arg0[%c0, %c0_0] : memref<16x768xf32, #tpu.memory_space<vmem>>, vector<16x768xf32>
    %1 = arith.truncf %0 : vector<16x768xf32> to vector<16x768xbf16>
    %c0_1 = arith.constant 0 : index
    %c0_2 = arith.constant 0 : index
    %2 = vector.load %arg1[%c0_1, %c0_2] : memref<768x512xbf16, #tpu.memory_space<vmem>>, vector<768x512xbf16>
    %cst = arith.constant dense<0.000000e+00> : vector<16x512xf32>
    %3 = tpu.matmul %1, %2, %cst {dimension_numbers = #tpu.dot_dimension_numbers<[1], [0], [0], [1], [0, 0, 1, 1], [], []>} : vector<16x768xbf16>, vector<768x512xbf16>, vector<16x512xf32> -> vector<16x512xf32>
    %c0_3 = arith.constant 0 : index
    %c0_4 = arith.constant 0 : index
    %4 = vector.load %arg2[%c0_3, %c0_4] : memref<1x512xf32, #tpu.memory_space<vmem>>, vector<1x512xf32>
    %5 = vector.broadcast %4 : vector<1x512xf32> to vector<16x512xf32>
    %6 = arith.addf %3, %5 : vector<16x512xf32>
    %cst_5 = arith.constant 0.000000e+00 : f32
    %7 = vector.broadcast %cst_5 : f32 to vector<16x512xf32>
    %8 = arith.maximumf %6, %7 : vector<16x512xf32>
    %9 = arith.truncf %8 : vector<16x512xf32> to vector<16x512xbf16>
    %c0_6 = arith.constant 0 : index
    %c0_7 = arith.constant 0 : index
    %10 = vector.load %arg3[%c0_6, %c0_7] : memref<512x256xbf16, #tpu.memory_space<vmem>>, vector<512x256xbf16>
    %cst_8 = arith.constant dense<0.000000e+00> : vector<16x256xf32>
    %11 = tpu.matmul %9, %10, %cst_8 {dimension_numbers = #tpu.dot_dimension_numbers<[1], [0], [0], [1], [0, 0, 1, 1], [], []>} : vector<16x512xbf16>, vector<512x256xbf16>, vector<16x256xf32> -> vector<16x256xf32>
    %c0_9 = arith.constant 0 : index
    %c0_10 = arith.constant 0 : index
    %12 = vector.load %arg4[%c0_9, %c0_10] : memref<1x256xf32, #tpu.memory_space<vmem>>, vector<1x256xf32>
    %13 = vector.broadcast %12 : vector<1x256xf32> to vector<16x256xf32>
    %14 = arith.addf %11, %13 : vector<16x256xf32>
    %15 = vector.extract_strided_slice %14 {offsets = [0, 0], sizes = [8, 256], strides = [1, 1]} : vector<16x256xf32> to vector<8x256xf32>
    %16 = vector.extract_strided_slice %14 {offsets = [8, 0], sizes = [8, 256], strides = [1, 1]} : vector<16x256xf32> to vector<8x256xf32>
    %c0_11 = arith.constant 0 : index
    %c0_12 = arith.constant 0 : index
    %17 = vector.load %arg5[%c0_11, %c0_12] : memref<2x256xf32, #tpu.memory_space<vmem>>, vector<2x256xf32>
    %cst_13 = arith.constant dense<0.000000e+00> : vector<8x2xf32>
    %18 = tpu.matmul %15, %17, %cst_13 {dimension_numbers = #tpu.dot_dimension_numbers<[1], [1], [0], [0], [0, 0, 1, 0], [], []>} : vector<8x256xf32>, vector<2x256xf32>, vector<8x2xf32> -> vector<8x2xf32>
    %c0_14 = arith.constant 0 : index
    %c0_15 = arith.constant 0 : index
    %19 = vector.load %arg6[%c0_14, %c0_15] : memref<2x256xf32, #tpu.memory_space<vmem>>, vector<2x256xf32>
    %cst_16 = arith.constant dense<0.000000e+00> : vector<8x2xf32>
    %20 = tpu.matmul %16, %19, %cst_16 {dimension_numbers = #tpu.dot_dimension_numbers<[1], [1], [0], [0], [0, 0, 1, 0], [], []>} : vector<8x256xf32>, vector<2x256xf32>, vector<8x2xf32> -> vector<8x2xf32>
    %21 = arith.addf %18, %20 : vector<8x2xf32>
    %c0_17 = arith.constant 0 : index
    %c0_18 = arith.constant 0 : index
    %22 = vector.load %arg7[%c0_17, %c0_18] : memref<1x2xf32, #tpu.memory_space<vmem>>, vector<1x2xf32>
    %23 = vector.broadcast %22 : vector<1x2xf32> to vector<8x2xf32>
    %24 = arith.addf %21, %23 : vector<8x2xf32>
    %cst_19 = arith.constant 0.000000e+00 : f32
    %25 = vector.broadcast %cst_19 : f32 to vector<8x2xf32>
    %26 = arith.subf %25, %24 : vector<8x2xf32>
    %27 = math.exp %26 : vector<8x2xf32>
    %cst_20 = arith.constant 1.000000e+00 : f32
    %28 = vector.broadcast %cst_20 : f32 to vector<8x2xf32>
    %29 = arith.addf %28, %27 : vector<8x2xf32>
    %30 = tpu.reciprocal %29 {approx = true} : vector<8x2xf32> -> vector<8x2xf32>
    %31 = vector.extract_strided_slice %30 {offsets = [0, 0], sizes = [8, 1], strides = [1, 1]} : vector<8x2xf32> to vector<8x1xf32>
    %32 = vector.broadcast %31 : vector<8x1xf32> to vector<8x256xf32>
    %33 = arith.mulf %15, %32 : vector<8x256xf32>
    %34 = vector.extract_strided_slice %30 {offsets = [0, 1], sizes = [8, 1], strides = [1, 1]} : vector<8x2xf32> to vector<8x1xf32>
    %35 = vector.broadcast %34 : vector<8x1xf32> to vector<8x256xf32>
    %36 = arith.mulf %16, %35 : vector<8x256xf32>
    %37 = arith.addf %33, %36 : vector<8x256xf32>
    %c0_21 = arith.constant 0 : index
    %c0_22 = arith.constant 0 : index
    %38 = vector.load %arg8[%c0_21, %c0_22] : memref<2x256xf32, #tpu.memory_space<vmem>>, vector<2x256xf32>
    %cst_23 = arith.constant dense<0.000000e+00> : vector<8x2xf32>
    %39 = tpu.matmul %37, %38, %cst_23 {dimension_numbers = #tpu.dot_dimension_numbers<[1], [1], [0], [0], [0, 0, 1, 0], [], []>} : vector<8x256xf32>, vector<2x256xf32>, vector<8x2xf32> -> vector<8x2xf32>
    %c0_24 = arith.constant 0 : index
    %c0_25 = arith.constant 0 : index
    %40 = vector.load %arg9[%c0_24, %c0_25] : memref<1x2xf32, #tpu.memory_space<vmem>>, vector<1x2xf32>
    %41 = vector.broadcast %40 : vector<1x2xf32> to vector<8x2xf32>
    %42 = arith.addf %39, %41 : vector<8x2xf32>
    %cst_26 = arith.constant dense<0xFF800000> : vector<8xf32>
    %43 = vector.multi_reduction <maximumf>, %42, %cst_26 [1] : vector<8x2xf32> to vector<8xf32>
    %44 = vector.shape_cast %43 : vector<8xf32> to vector<8x1xf32>
    %45 = vector.broadcast %44 : vector<8x1xf32> to vector<8x2xf32>
    %46 = arith.subf %42, %45 : vector<8x2xf32>
    %47 = math.exp %46 : vector<8x2xf32>
    %cst_27 = arith.constant dense<0.000000e+00> : vector<8xf32>
    %48 = vector.multi_reduction <add>, %47, %cst_27 [1] : vector<8x2xf32> to vector<8xf32>
    %49 = vector.shape_cast %48 : vector<8xf32> to vector<8x1xf32>
    %50 = math.log %49 : vector<8x1xf32>
    %51 = vector.broadcast %50 : vector<8x1xf32> to vector<8x2xf32>
    %52 = arith.subf %46, %51 : vector<8x2xf32>
    %c0_28 = arith.constant 0 : index
    %c0_29 = arith.constant 0 : index
    %53 = vector.load %arg10[%c0_28, %c0_29] : memref<8x2xf32, #tpu.memory_space<vmem>>, vector<8x2xf32>
    tpu.vector_store %arg10[%c0_28, %c0_29], %52 {strides = array<i32>} : memref<8x2xf32, #tpu.memory_space<vmem>>, vector<8x2xf32>,
    return
  }
}

</mosaic_0001>

<llo_original>
// kernel: multimodel_sharebackbone_mlp_forward.1
$region0: #{multimodel_sharebackbone_mlp_forward.1}
  #allocation0 [shape = 'u32[]', space=smem, size = 0x4, offset = 0x4, fixed_abs, tag = 'smem constant byte address 0x4 - core index']
  #allocation1 [shape = 'u32[72,128]{1,0:T(1,128)}', space=vmem, size = 0x9000, scoped, tag = 'internal scratch']
  %s0 = inlined_call_operand.vmem [shape: f32[16,768], index: 0, kind: input, shape index: {}]
  %s1 = inlined_call_operand.hbm [shape: bf16[768,512], index: 1, kind: input, shape index: {}]
  %s2 = inlined_call_operand.vmem [shape: f32[1,512], index: 2, kind: input, shape index: {}]
  %s3 = inlined_call_operand.hbm [shape: bf16[512,256], index: 3, kind: input, shape index: {}]
  %s4 = inlined_call_operand.vmem [shape: f32[1,256], index: 4, kind: input, shape index: {}]
  %s5 = inlined_call_operand.vmem [shape: f32[2,256], index: 5, kind: input, shape index: {}]
  %s6 = inlined_call_operand.vmem [shape: f32[2,256], index: 6, kind: input, shape index: {}]
  %s7 = inlined_call_operand.vmem [shape: f32[1,2], index: 7, kind: input, shape index: {}]
  %s8 = inlined_call_operand.vmem [shape: f32[2,256], index: 8, kind: input, shape index: {}]
  %s9 = inlined_call_operand.vmem [shape: f32[1,2], index: 9, kind: input, shape index: {}]
  %s10 = inlined_call_operand.vmem [shape: f32[8,2], index: 10, kind: output, shape index: {}]
  %s11 = sld [smem:[#allocation0]]
  $region58: #{multimodel_sharebackbone_mlp_forward.1} parent=0
    _
  %s13 = ssub.s32 1, %s11
  %s14 = scalar_select 0, %s13, %s11
  $region1: #{multimodel_sharebackbone_mlp_forward.1} parent=0
    #allocation2 [shape = 'u8[786432]{0}', space=vmem, size = 0xc0000, scoped, tag = 'input window, operand 1, single buffered']
    #allocation3 [shape = 's32[1]{0}', space=sflag, size = 0x4, scoped, tag = 'scoped memory for multimodel_sharebackbone_mlp_forward.1']
    #allocation4 [shape = 'u8[262144]{0}', space=vmem, size = 0x40000, scoped, tag = 'input window, operand 3, single buffered']
    #allocation5 [shape = 's32[1]{0}', space=sflag, size = 0x4, scoped, tag = 'scoped memory for multimodel_sharebackbone_mlp_forward.1']
    %15 = vsyncpa [#allocation3], 0
    %16 = vsyncpa [#allocation5], 0
    // Predicated region
    $region2: #{multimodel_sharebackbone_mlp_forward.1} parent=1 // pred_check
      _
    $region3: #{multimodel_sharebackbone_mlp_forward.1} parent=1 // pred_check_branch
      %18 = sbr.rel (0) target = $region5
    $region4: #{multimodel_sharebackbone_mlp_forward.1} parent=1 // pred_region
      _
    $region5: #{multimodel_sharebackbone_mlp_forward.1} parent=1 // pred_fallthru
      _
    // Predicated region
    $region6: #{multimodel_sharebackbone_mlp_forward.1} parent=1 // pred_check
      _
    $region7: #{multimodel_sharebackbone_mlp_forward.1} parent=1 // pred_check_branch
      %20 = sbr.rel (0) target = $region9
    $region8: #{multimodel_sharebackbone_mlp_forward.1} parent=1 // pred_region
      %22 = vsyncadd [#allocation3], 0
      %s23 = sshll.u32 %s1, 4
      %s24 = int_to_ptr.hbm [resolvable:$true] %s23
      %s25 = sshll.u32 [#allocation2], 4
      %s26 = int_to_ptr.vmem [resolvable:$true] %s25
      %31 = dma.hbm_to_vmem [thread:$0]  %s24, 24576, %s26, [#allocation3], 256, 256, 16
    $region9: #{multimodel_sharebackbone_mlp_forward.1} parent=1 // pred_fallthru
      _
    // Predicated region
    $region10: #{multimodel_sharebackbone_mlp_forward.1} parent=1 // pred_check
      _
    $region11: #{multimodel_sharebackbone_mlp_forward.1} parent=1 // pred_check_branch
      %33 = sbr.rel (0) target = $region13
    $region12: #{multimodel_sharebackbone_mlp_forward.1} parent=1 // pred_region
      _
    $region13: #{multimodel_sharebackbone_mlp_forward.1} parent=1 // pred_fallthru
      _
    // Predicated region
    $region14: #{multimodel_sharebackbone_mlp_forward.1} parent=1 // pred_check
      _
    $region15: #{multimodel_sharebackbone_mlp_forward.1} parent=1 // pred_check_branch
      %35 = sbr.rel (0) target = $region17
    $region16: #{multimodel_sharebackbone_mlp_forward.1} parent=1 // pred_region
      %37 = vsyncadd [#allocation5], 0
      %s38 = sshll.u32 %s3, 4
      %s39 = int_to_ptr.hbm [resolvable:$true] %s38
      %s40 = sshll.u32 [#allocation4], 4
      %s41 = int_to_ptr.vmem [resolvable:$true] %s40
      %46 = dma.hbm_to_vmem [thread:$0]  %s39, 8192, %s41, [#allocation5], 128, 128, 8
    $region17: #{multimodel_sharebackbone_mlp_forward.1} parent=1 // pred_fallthru
      _
    // Predicated region
    $region18: #{multimodel_sharebackbone_mlp_forward.1} parent=1 // pred_check
      _
    $region19: #{multimodel_sharebackbone_mlp_forward.1} parent=1 // pred_check_branch
      %48 = sbr.rel (0) target = $region21
    $region20: #{multimodel_sharebackbone_mlp_forward.1} parent=1 // pred_region
      _
    $region21: #{multimodel_sharebackbone_mlp_forward.1} parent=1 // pred_fallthru
      _
    // Predicated region
    $region22: #{multimodel_sharebackbone_mlp_forward.1} parent=1 // pred_check
      _
    $region23: #{multimodel_sharebackbone_mlp_forward.1} parent=1 // pred_check_branch
      %50 = sbr.rel (0) target = $region25
    $region24: #{multimodel_sharebackbone_mlp_forward.1} parent=1 // pred_region
      _
    $region25: #{multimodel_sharebackbone_mlp_forward.1} parent=1 // pred_fallthru
      _
    // Predicated region
    $region26: #{multimodel_sharebackbone_mlp_forward.1} parent=1 // pred_check
      _
    $region27: #{multimodel_sharebackbone_mlp_forward.1} parent=1 // pred_check_branch
      %52 = sbr.rel (0) target = $region29
    $region28: #{multimodel_sharebackbone_mlp_forward.1} parent=1 // pred_region
      _
    $region29: #{multimodel_sharebackbone_mlp_forward.1} parent=1 // pred_fallthru
      _
    // Predicated region
    $region30: #{multimodel_sharebackbone_mlp_forward.1} parent=1 // pred_check
      _
    $region31: #{multimodel_sharebackbone_mlp_forward.1} parent=1 // pred_check_branch
      %54 = sbr.rel (0) target = $region33
    $region32: #{multimodel_sharebackbone_mlp_forward.1} parent=1 // pred_region
      _
    $region33: #{multimodel_sharebackbone_mlp_forward.1} parent=1 // pred_fallthru
      _
    // Predicated region
    $region34: #{multimodel_sharebackbone_mlp_forward.1} parent=1 // pred_check
      _
    $region35: #{multimodel_sharebackbone_mlp_forward.1} parent=1 // pred_check_branch
      %56 = sbr.rel (0) target = $region37
    $region36: #{multimodel_sharebackbone_mlp_forward.1} parent=1 // pred_region
      _
    $region37: #{multimodel_sharebackbone_mlp_forward.1} parent=1 // pred_fallthru
      _
    // Predicated region
    $region38: #{multimodel_sharebackbone_mlp_forward.1} parent=1 // pred_check
      _
    $region39: #{multimodel_sharebackbone_mlp_forward.1} parent=1 // pred_check_branch
      %58 = sbr.rel (0) target = $region41
    $region40: #{multimodel_sharebackbone_mlp_forward.1} parent=1 // pred_region
      _
    $region41: #{multimodel_sharebackbone_mlp_forward.1} parent=1 // pred_fallthru
      _
    // Predicated region
    $region42: #{multimodel_sharebackbone_mlp_forward.1} parent=1 // pred_check
      _
    $region43: #{multimodel_sharebackbone_mlp_forward.1} parent=1 // pred_check_branch
      %60 = sbr.rel (0) target = $region45
    $region44: #{multimodel_sharebackbone_mlp_forward.1} parent=1 // pred_region
      %62 = dma.done [#allocation3], 24576
    $region45: #{multimodel_sharebackbone_mlp_forward.1} parent=1 // pred_fallthru
      _
    // Predicated region
    $region46: #{multimodel_sharebackbone_mlp_forward.1} parent=1 // pred_check
      _
    $region47: #{multimodel_sharebackbone_mlp_forward.1} parent=1 // pred_check_branch
      %64 = sbr.rel (0) target = $region49
    $region48: #{multimodel_sharebackbone_mlp_forward.1} parent=1 // pred_region
      %66 = dma.done [#allocation5], 8192
    $region49: #{multimodel_sharebackbone_mlp_forward.1} parent=1 // pred_fallthru
      _
    %v67 = vld [vmem:[%s0] sm:$0xff]
    %v68 = vld [vmem:[%s0 + $0x8] sm:$0xff]
    %v69 = vld [vmem:[%s0 + $0x10] sm:$0xff]
    %v70 = vld [vmem:[%s0 + $0x18] sm:$0xff]
    %v71 = vld [vmem:[%s0 + $0x20] sm:$0xff]
    %v72 = vld [vmem:[%s0 + $0x28] sm:$0xff]
    %v73 = vld [vmem:[%s0 + $0x30] sm:$0xff]
    %v74 = vld [vmem:[%s0 + $0x38] sm:$0xff]
    %v75 = vld [vmem:[%s0 + $0x40] sm:$0xff]
    %v76 = vld [vmem:[%s0 + $0x48] sm:$0xff]
    %v77 = vld [vmem:[%s0 + $0x50] sm:$0xff]
    %v78 = vld [vmem:[%s0 + $0x58] sm:$0xff]
    %v79 = vpack.c.bf16 %v73, %v67
    %v80 = vpack.c.bf16 %v74, %v68
    %v81 = vpack.c.bf16 %v75, %v69
    %v82 = vpack.c.bf16 %v76, %v70
    %v83 = vpack.c.bf16 %v77, %v71
    %v84 = vpack.c.bf16 %v78, %v72
    %v85 = vld [vmem:[#allocation2] sm:$0xff]
    %v86 = vld [vmem:[#allocation2 + $0x8] sm:$0xff]
    %v87 = vld [vmem:[#allocation2 + $0x10] sm:$0xff]
    %v88 = vld [vmem:[#allocation2 + $0x18] sm:$0xff]
    %v89 = vld [vmem:[#allocation2 + $0x20] sm:$0xff]
    %v90 = vld [vmem:[#allocation2 + $0x28] sm:$0xff]
    %v91 = vld [vmem:[#allocation2 + $0x30] sm:$0xff]
    %v92 = vld [vmem:[#allocation2 + $0x38] sm:$0xff]
    %v93 = vld [vmem:[#allocation2 + $0x40] sm:$0xff]
    %v94 = vld [vmem:[#allocation2 + $0x48] sm:$0xff]
    %v95 = vld [vmem:[#allocation2 + $0x50] sm:$0xff]
    %v96 = vld [vmem:[#allocation2 + $0x58] sm:$0xff]
    %v97 = vld [vmem:[#allocation2 + $0x60] sm:$0xff]
    %v98 = vld [vmem:[#allocation2 + $0x68] sm:$0xff]
    %v99 = vld [vmem:[#allocation2 + $0x70] sm:$0xff]
    %v100 = vld [vmem:[#allocation2 + $0x78] sm:$0xff]
    %v101 = vld [vmem:[#allocation2 + $0x80] sm:$0xff]
    %v102 = vld [vmem:[#allocation2 + $0x88] sm:$0xff]
    %v103 = vld [vmem:[#allocation2 + $0x90] sm:$0xff]
    %v104 = vld [vmem:[#allocation2 + $0x98] sm:$0xff]
    %v105 = vld [vmem:[#allocation2 + $0xa0] sm:$0xff]
    %v106 = vld [vmem:[#allocation2 + $0xa8] sm:$0xff]
    %v107 = vld [vmem:[#allocation2 + $0xb0] sm:$0xff]
    %v108 = vld [vmem:[#allocation2 + $0xb8] sm:$0xff]
    %v109 = vld [vmem:[#allocation2 + $0xc0] sm:$0xff]
    %v110 = vld [vmem:[#allocation2 + $0xc8] sm:$0xff]
    %v111 = vld [vmem:[#allocation2 + $0xd0] sm:$0xff]
    %v112 = vld [vmem:[#allocation2 + $0xd8] sm:$0xff]
    %v113 = vld [vmem:[#allocation2 + $0xe0] sm:$0xff]
    %v114 = vld [vmem:[#allocation2 + $0xe8] sm:$0xff]
    %v115 = vld [vmem:[#allocation2 + $0xf0] sm:$0xff]
    %v116 = vld [vmem:[#allocation2 + $0xf8] sm:$0xff]
    %v117 = vld [vmem:[#allocation2 + $0x100] sm:$0xff]
    %v118 = vld [vmem:[#allocation2 + $0x108] sm:$0xff]
    %v119 = vld [vmem:[#allocation2 + $0x110] sm:$0xff]
    %v120 = vld [vmem:[#allocation2 + $0x118] sm:$0xff]
    %v121 = vld [vmem:[#allocation2 + $0x120] sm:$0xff]
    %v122 = vld [vmem:[#allocation2 + $0x128] sm:$0xff]
    %v123 = vld [vmem:[#allocation2 + $0x130] sm:$0xff]
    %v124 = vld [vmem:[#allocation2 + $0x138] sm:$0xff]
    %v125 = vld [vmem:[#allocation2 + $0x140] sm:$0xff]
    %v126 = vld [vmem:[#allocation2 + $0x148] sm:$0xff]
    %v127 = vld [vmem:[#allocation2 + $0x150] sm:$0xff]
    %v128 = vld [vmem:[#allocation2 + $0x158] sm:$0xff]
    %v129 = vld [vmem:[#allocation2 + $0x160] sm:$0xff]
    %v130 = vld [vmem:[#allocation2 + $0x168] sm:$0xff]
    %v131 = vld [vmem:[#allocation2 + $0x170] sm:$0xff]
    %v132 = vld [vmem:[#allocation2 + $0x178] sm:$0xff]
    %v133 = vld [vmem:[#allocation2 + $0x180] sm:$0xff]
    %v134 = vld [vmem:[#allocation2 + $0x188] sm:$0xff]
    %v135 = vld [vmem:[#allocation2 + $0x190] sm:$0xff]
    %v136 = vld [vmem:[#allocation2 + $0x198] sm:$0xff]
    %v137 = vld [vmem:[#allocation2 + $0x1a0] sm:$0xff]
    %v138 = vld [vmem:[#allocation2 + $0x1a8] sm:$0xff]
    %v139 = vld [vmem:[#allocation2 + $0x1b0] sm:$0xff]
    %v140 = vld [vmem:[#allocation2 + $0x1b8] sm:$0xff]
    %v141 = vld [vmem:[#allocation2 + $0x1c0] sm:$0xff]
    %v142 = vld [vmem:[#allocation2 + $0x1c8] sm:$0xff]
    %v143 = vld [vmem:[#allocation2 + $0x1d0] sm:$0xff]
    %v144 = vld [vmem:[#allocation2 + $0x1d8] sm:$0xff]
    %v145 = vld [vmem:[#allocation2 + $0x1e0] sm:$0xff]
    %v146 = vld [vmem:[#allocation2 + $0x1e8] sm:$0xff]
    %v147 = vld [vmem:[#allocation2 + $0x1f0] sm:$0xff]
    %v148 = vld [vmem:[#allocation2 + $0x1f8] sm:$0xff]
    %v149 = vld [vmem:[#allocation2 + $0x200] sm:$0xff]
    %v150 = vld [vmem:[#allocation2 + $0x208] sm:$0xff]
    %v151 = vld [vmem:[#allocation2 + $0x210] sm:$0xff]
    %v152 = vld [vmem:[#allocation2 + $0x218] sm:$0xff]
    %v153 = vld [vmem:[#allocation2 + $0x220] sm:$0xff]
    %v154 = vld [vmem:[#allocation2 + $0x228] sm:$0xff]
    %v155 = vld [vmem:[#allocation2 + $0x230] sm:$0xff]
    %v156 = vld [vmem:[#allocation2 + $0x238] sm:$0xff]
    %v157 = vld [vmem:[#allocation2 + $0x240] sm:$0xff]
    %v158 = vld [vmem:[#allocation2 + $0x248] sm:$0xff]
    %v159 = vld [vmem:[#allocation2 + $0x250] sm:$0xff]
    %v160 = vld [vmem:[#allocation2 + $0x258] sm:$0xff]
    %v161 = vld [vmem:[#allocation2 + $0x260] sm:$0xff]
    %v162 = vld [vmem:[#allocation2 + $0x268] sm:$0xff]
    %v163 = vld [vmem:[#allocation2 + $0x270] sm:$0xff]
    %v164 = vld [vmem:[#allocation2 + $0x278] sm:$0xff]
    %v165 = vld [vmem:[#allocation2 + $0x280] sm:$0xff]
    %v166 = vld [vmem:[#allocation2 + $0x288] sm:$0xff]
    %v167 = vld [vmem:[#allocation2 + $0x290] sm:$0xff]
    %v168 = vld [vmem:[#allocation2 + $0x298] sm:$0xff]
    %v169 = vld [vmem:[#allocation2 + $0x2a0] sm:$0xff]
    %v170 = vld [vmem:[#allocation2 + $0x2a8] sm:$0xff]
    %v171 = vld [vmem:[#allocation2 + $0x2b0] sm:$0xff]
    %v172 = vld [vmem:[#allocation2 + $0x2b8] sm:$0xff]
    %v173 = vld [vmem:[#allocation2 + $0x2c0] sm:$0xff]
    %v174 = vld [vmem:[#allocation2 + $0x2c8] sm:$0xff]
    %v175 = vld [vmem:[#allocation2 + $0x2d0] sm:$0xff]
    %v176 = vld [vmem:[#allocation2 + $0x2d8] sm:$0xff]
    %v177 = vld [vmem:[#allocation2 + $0x2e0] sm:$0xff]
    %v178 = vld [vmem:[#allocation2 + $0x2e8] sm:$0xff]
    %v179 = vld [vmem:[#allocation2 + $0x2f0] sm:$0xff]
    %v180 = vld [vmem:[#allocation2 + $0x2f8] sm:$0xff]
    %v181 = vld [vmem:[#allocation2 + $0x300] sm:$0xff]
    %v182 = vld [vmem:[#allocation2 + $0x308] sm:$0xff]
    %v183 = vld [vmem:[#allocation2 + $0x310] sm:$0xff]
    %v184 = vld [vmem:[#allocation2 + $0x318] sm:$0xff]
    %v185 = vld [vmem:[#allocation2 + $0x320] sm:$0xff]
    %v186 = vld [vmem:[#allocation2 + $0x328] sm:$0xff]
    %v187 = vld [vmem:[#allocation2 + $0x330] sm:$0xff]
    %v188 = vld [vmem:[#allocation2 + $0x338] sm:$0xff]
    %v189 = vld [vmem:[#allocation2 + $0x340] sm:$0xff]
    %v190 = vld [vmem:[#allocation2 + $0x348] sm:$0xff]
    %v191 = vld [vmem:[#allocation2 + $0x350] sm:$0xff]
    %v192 = vld [vmem:[#allocation2 + $0x358] sm:$0xff]
    %v193 = vld [vmem:[#allocation2 + $0x360] sm:$0xff]
    %v194 = vld [vmem:[#allocation2 + $0x368] sm:$0xff]
    %v195 = vld [vmem:[#allocation2 + $0x370] sm:$0xff]
    %v196 = vld [vmem:[#allocation2 + $0x378] sm:$0xff]
    %v197 = vld [vmem:[#allocation2 + $0x380] sm:$0xff]
    %v198 = vld [vmem:[#allocation2 + $0x388] sm:$0xff]
    %v199 = vld [vmem:[#allocation2 + $0x390] sm:$0xff]
    %v200 = vld [vmem:[#allocation2 + $0x398] sm:$0xff]
    %v201 = vld [vmem:[#allocation2 + $0x3a0] sm:$0xff]
    %v202 = vld [vmem:[#allocation2 + $0x3a8] sm:$0xff]
    %v203 = vld [vmem:[#allocation2 + $0x3b0] sm:$0xff]
    %v204 = vld [vmem:[#allocation2 + $0x3b8] sm:$0xff]
    %v205 = vld [vmem:[#allocation2 + $0x3c0] sm:$0xff]
    %v206 = vld [vmem:[#allocation2 + $0x3c8] sm:$0xff]
    %v207 = vld [vmem:[#allocation2 + $0x3d0] sm:$0xff]
    %v208 = vld [vmem:[#allocation2 + $0x3d8] sm:$0xff]
    %v209 = vld [vmem:[#allocation2 + $0x3e0] sm:$0xff]
    %v210 = vld [vmem:[#allocation2 + $0x3e8] sm:$0xff]
    %v211 = vld [vmem:[#allocation2 + $0x3f0] sm:$0xff]
    %v212 = vld [vmem:[#allocation2 + $0x3f8] sm:$0xff]
    %v213 = vld [vmem:[#allocation2 + $0x400] sm:$0xff]
    %v214 = vld [vmem:[#allocation2 + $0x408] sm:$0xff]
    %v215 = vld [vmem:[#allocation2 + $0x410] sm:$0xff]
    %v216 = vld [vmem:[#allocation2 + $0x418] sm:$0xff]
    %v217 = vld [vmem:[#allocation2 + $0x420] sm:$0xff]
    %v218 = vld [vmem:[#allocation2 + $0x428] sm:$0xff]
    %v219 = vld [vmem:[#allocation2 + $0x430] sm:$0xff]
    %v220 = vld [vmem:[#allocation2 + $0x438] sm:$0xff]
    %v221 = vld [vmem:[#allocation2 + $0x440] sm:$0xff]
    %v222 = vld [vmem:[#allocation2 + $0x448] sm:$0xff]
    %v223 = vld [vmem:[#allocation2 + $0x450] sm:$0xff]
    %v224 = vld [vmem:[#allocation2 + $0x458] sm:$0xff]
    %v225 = vld [vmem:[#allocation2 + $0x460] sm:$0xff]
    %v226 = vld [vmem:[#allocation2 + $0x468] sm:$0xff]
    %v227 = vld [vmem:[#allocation2 + $0x470] sm:$0xff]
    %v228 = vld [vmem:[#allocation2 + $0x478] sm:$0xff]
    %v229 = vld [vmem:[#allocation2 + $0x480] sm:$0xff]
    %v230 = vld [vmem:[#allocation2 + $0x488] sm:$0xff]
    %v231 = vld [vmem:[#allocation2 + $0x490] sm:$0xff]
    %v232 = vld [vmem:[#allocation2 + $0x498] sm:$0xff]
    %v233 = vld [vmem:[#allocation2 + $0x4a0] sm:$0xff]
    %v234 = vld [vmem:[#allocation2 + $0x4a8] sm:$0xff]
    %v235 = vld [vmem:[#allocation2 + $0x4b0] sm:$0xff]
    %v236 = vld [vmem:[#allocation2 + $0x4b8] sm:$0xff]
    %v237 = vld [vmem:[#allocation2 + $0x4c0] sm:$0xff]
    %v238 = vld [vmem:[#allocation2 + $0x4c8] sm:$0xff]
    %v239 = vld [vmem:[#allocation2 + $0x4d0] sm:$0xff]
    %v240 = vld [vmem:[#allocation2 + $0x4d8] sm:$0xff]
    %v241 = vld [vmem:[#allocation2 + $0x4e0] sm:$0xff]
    %v242 = vld [vmem:[#allocation2 + $0x4e8] sm:$0xff]
    %v243 = vld [vmem:[#allocation2 + $0x4f0] sm:$0xff]
    %v244 = vld [vmem:[#allocation2 + $0x4f8] sm:$0xff]
    %v245 = vld [vmem:[#allocation2 + $0x500] sm:$0xff]
    %v246 = vld [vmem:[#allocation2 + $0x508] sm:$0xff]
    %v247 = vld [vmem:[#allocation2 + $0x510] sm:$0xff]
    %v248 = vld [vmem:[#allocation2 + $0x518] sm:$0xff]
    %v249 = vld [vmem:[#allocation2 + $0x520] sm:$0xff]
    %v250 = vld [vmem:[#allocation2 + $0x528] sm:$0xff]
    %v251 = vld [vmem:[#allocation2 + $0x530] sm:$0xff]
    %v252 = vld [vmem:[#allocation2 + $0x538] sm:$0xff]
    %v253 = vld [vmem:[#allocation2 + $0x540] sm:$0xff]
    %v254 = vld [vmem:[#allocation2 + $0x548] sm:$0xff]
    %v255 = vld [vmem:[#allocation2 + $0x550] sm:$0xff]
    %v256 = vld [vmem:[#allocation2 + $0x558] sm:$0xff]
    %v257 = vld [vmem:[#allocation2 + $0x560] sm:$0xff]
    %v258 = vld [vmem:[#allocation2 + $0x568] sm:$0xff]
    %v259 = vld [vmem:[#allocation2 + $0x570] sm:$0xff]
    %v260 = vld [vmem:[#allocation2 + $0x578] sm:$0xff]
    %v261 = vld [vmem:[#allocation2 + $0x580] sm:$0xff]
    %v262 = vld [vmem:[#allocation2 + $0x588] sm:$0xff]
    %v263 = vld [vmem:[#allocation2 + $0x590] sm:$0xff]
    %v264 = vld [vmem:[#allocation2 + $0x598] sm:$0xff]
    %v265 = vld [vmem:[#allocation2 + $0x5a0] sm:$0xff]
    %v266 = vld [vmem:[#allocation2 + $0x5a8] sm:$0xff]
    %v267 = vld [vmem:[#allocation2 + $0x5b0] sm:$0xff]
    %v268 = vld [vmem:[#allocation2 + $0x5b8] sm:$0xff]
    %v269 = vld [vmem:[#allocation2 + $0x5c0] sm:$0xff]
    %v270 = vld [vmem:[#allocation2 + $0x5c8] sm:$0xff]
    %v271 = vld [vmem:[#allocation2 + $0x5d0] sm:$0xff]
    %v272 = vld [vmem:[#allocation2 + $0x5d8] sm:$0xff]
    %v273 = vld [vmem:[#allocation2 + $0x5e0] sm:$0xff]
    %v274 = vld [vmem:[#allocation2 + $0x5e8] sm:$0xff]
    %v275 = vld [vmem:[#allocation2 + $0x5f0] sm:$0xff]
    %v276 = vld [vmem:[#allocation2 + $0x5f8] sm:$0xff]
    %v277 = vld [vmem:[%s2] sm:$0xf]
    %v279 = vperm.slane %v277, 0
    %v280 = vperm.slane %v277, 1
    %v281 = vperm.slane %v277, 2
    %v282 = vperm.slane %v277, 3
    %v479 = vunpack.c.l.b16 %v85
    %v480 = vunpack.c.h.b16 %v85
    %v481 = vunpack.c.l.b16 %v86
    %v482 = vunpack.c.h.b16 %v86
    %v483 = vunpack.c.l.b16 %v87
    %v484 = vunpack.c.h.b16 %v87
    %v485 = vunpack.c.l.b16 %v88
    %v486 = vunpack.c.h.b16 %v88
    %v487 = vunpack.c.l.b16 %v89
    %v488 = vunpack.c.h.b16 %v89
    %v489 = vunpack.c.l.b16 %v90
    %v490 = vunpack.c.h.b16 %v90
    %v491 = vunpack.c.l.b16 %v91
    %v492 = vunpack.c.h.b16 %v91
    %v493 = vunpack.c.l.b16 %v92
    %v494 = vunpack.c.h.b16 %v92
    %v495 = vunpack.c.l.b16 %v93
    %v496 = vunpack.c.h.b16 %v93
    %v497 = vunpack.c.l.b16 %v94
    %v498 = vunpack.c.h.b16 %v94
    %v499 = vunpack.c.l.b16 %v95
    %v500 = vunpack.c.h.b16 %v95
    %v501 = vunpack.c.l.b16 %v96
    %v502 = vunpack.c.h.b16 %v96
    %v503 = vunpack.c.l.b16 %v97
    %v504 = vunpack.c.h.b16 %v97
    %v505 = vunpack.c.l.b16 %v98
    %v506 = vunpack.c.h.b16 %v98
    %v507 = vunpack.c.l.b16 %v99
    %v508 = vunpack.c.h.b16 %v99
    %v509 = vunpack.c.l.b16 %v100
    %v510 = vunpack.c.h.b16 %v100
    %v511 = vunpack.c.l.b16 %v101
    %v512 = vunpack.c.h.b16 %v101
    %v513 = vunpack.c.l.b16 %v102
    %v514 = vunpack.c.h.b16 %v102
    %v515 = vunpack.c.l.b16 %v103
    %v516 = vunpack.c.h.b16 %v103
    %v517 = vunpack.c.l.b16 %v104
    %v518 = vunpack.c.h.b16 %v104
    %v519 = vunpack.c.l.b16 %v105
    %v520 = vunpack.c.h.b16 %v105
    %v521 = vunpack.c.l.b16 %v106
    %v522 = vunpack.c.h.b16 %v106
    %v523 = vunpack.c.l.b16 %v107
    %v524 = vunpack.c.h.b16 %v107
    %v525 = vunpack.c.l.b16 %v108
    %v526 = vunpack.c.h.b16 %v108
    %v527 = vunpack.c.l.b16 %v109
    %v528 = vunpack.c.h.b16 %v109
    %v529 = vunpack.c.l.b16 %v110
    %v530 = vunpack.c.h.b16 %v110
    %v531 = vunpack.c.l.b16 %v111
    %v532 = vunpack.c.h.b16 %v111
    %v533 = vunpack.c.l.b16 %v112
    %v534 = vunpack.c.h.b16 %v112
    %v535 = vunpack.c.l.b16 %v113
    %v536 = vunpack.c.h.b16 %v113
    %v537 = vunpack.c.l.b16 %v114
    %v538 = vunpack.c.h.b16 %v114
    %v539 = vunpack.c.l.b16 %v115
    %v540 = vunpack.c.h.b16 %v115
    %v541 = vunpack.c.l.b16 %v116
    %v542 = vunpack.c.h.b16 %v116
    %v543 = vunpack.c.l.b16 %v117
    %v544 = vunpack.c.h.b16 %v117
    %v545 = vunpack.c.l.b16 %v118
    %v546 = vunpack.c.h.b16 %v118
    %v547 = vunpack.c.l.b16 %v119
    %v548 = vunpack.c.h.b16 %v119
    %v549 = vunpack.c.l.b16 %v120
    %v550 = vunpack.c.h.b16 %v120
    %v551 = vunpack.c.l.b16 %v121
    %v552 = vunpack.c.h.b16 %v121
    %v553 = vunpack.c.l.b16 %v122
    %v554 = vunpack.c.h.b16 %v122
    %v555 = vunpack.c.l.b16 %v123
    %v556 = vunpack.c.h.b16 %v123
    %v557 = vunpack.c.l.b16 %v124
    %v558 = vunpack.c.h.b16 %v124
    %v559 = vunpack.c.l.b16 %v125
    %v560 = vunpack.c.h.b16 %v125
    %v561 = vunpack.c.l.b16 %v126
    %v562 = vunpack.c.h.b16 %v126
    %v563 = vunpack.c.l.b16 %v127
    %v564 = vunpack.c.h.b16 %v127
    %v565 = vunpack.c.l.b16 %v128
    %v566 = vunpack.c.h.b16 %v128
    %v567 = vunpack.c.l.b16 %v129
    %v568 = vunpack.c.h.b16 %v129
    %v569 = vunpack.c.l.b16 %v130
    %v570 = vunpack.c.h.b16 %v130
    %v571 = vunpack.c.l.b16 %v131
    %v572 = vunpack.c.h.b16 %v131
    %v573 = vunpack.c.l.b16 %v132
    %v574 = vunpack.c.h.b16 %v132
    %v575 = vunpack.c.l.b16 %v133
    %v576 = vunpack.c.h.b16 %v133
    %v577 = vunpack.c.l.b16 %v134
    %v578 = vunpack.c.h.b16 %v134
    %v579 = vunpack.c.l.b16 %v135
    %v580 = vunpack.c.h.b16 %v135
    %v581 = vunpack.c.l.b16 %v136
    %v582 = vunpack.c.h.b16 %v136
    %v583 = vunpack.c.l.b16 %v137
    %v584 = vunpack.c.h.b16 %v137
    %v585 = vunpack.c.l.b16 %v138
    %v586 = vunpack.c.h.b16 %v138
    %v587 = vunpack.c.l.b16 %v139
    %v588 = vunpack.c.h.b16 %v139
    %v589 = vunpack.c.l.b16 %v140
    %v590 = vunpack.c.h.b16 %v140
    %v591 = vunpack.c.l.b16 %v141
    %v592 = vunpack.c.h.b16 %v141
    %v593 = vunpack.c.l.b16 %v142
    %v594 = vunpack.c.h.b16 %v142
    %v595 = vunpack.c.l.b16 %v143
    %v596 = vunpack.c.h.b16 %v143
    %v597 = vunpack.c.l.b16 %v144
    %v598 = vunpack.c.h.b16 %v144
    %v599 = vunpack.c.l.b16 %v145
    %v600 = vunpack.c.h.b16 %v145
    %v601 = vunpack.c.l.b16 %v146
    %v602 = vunpack.c.h.b16 %v146
    %v603 = vunpack.c.l.b16 %v147
    %v604 = vunpack.c.h.b16 %v147
    %v605 = vunpack.c.l.b16 %v148
    %v606 = vunpack.c.h.b16 %v148
    %v607 = vunpack.c.l.b16 %v149
    %v608 = vunpack.c.h.b16 %v149
    %v609 = vunpack.c.l.b16 %v150
    %v610 = vunpack.c.h.b16 %v150
    %v611 = vunpack.c.l.b16 %v151
    %v612 = vunpack.c.h.b16 %v151
    %v613 = vunpack.c.l.b16 %v152
    %v614 = vunpack.c.h.b16 %v152
    %v615 = vunpack.c.l.b16 %v153
    %v616 = vunpack.c.h.b16 %v153
    %v617 = vunpack.c.l.b16 %v154
    %v618 = vunpack.c.h.b16 %v154
    %v619 = vunpack.c.l.b16 %v155
    %v620 = vunpack.c.h.b16 %v155
    %v621 = vunpack.c.l.b16 %v156
    %v622 = vunpack.c.h.b16 %v156
    %v623 = vunpack.c.l.b16 %v157
    %v624 = vunpack.c.h.b16 %v157
    %v625 = vunpack.c.l.b16 %v158
    %v626 = vunpack.c.h.b16 %v158
    %v627 = vunpack.c.l.b16 %v159
    %v628 = vunpack.c.h.b16 %v159
    %v629 = vunpack.c.l.b16 %v160
    %v630 = vunpack.c.h.b16 %v160
    %v631 = vunpack.c.l.b16 %v161
    %v632 = vunpack.c.h.b16 %v161
    %v633 = vunpack.c.l.b16 %v162
    %v634 = vunpack.c.h.b16 %v162
    %v635 = vunpack.c.l.b16 %v163
    %v636 = vunpack.c.h.b16 %v163
    %v637 = vunpack.c.l.b16 %v164
    %v638 = vunpack.c.h.b16 %v164
    %v639 = vunpack.c.l.b16 %v165
    %v640 = vunpack.c.h.b16 %v165
    %v641 = vunpack.c.l.b16 %v166
    %v642 = vunpack.c.h.b16 %v166
    %v643 = vunpack.c.l.b16 %v167
    %v644 = vunpack.c.h.b16 %v167
    %v645 = vunpack.c.l.b16 %v168
    %v646 = vunpack.c.h.b16 %v168
    %v647 = vunpack.c.l.b16 %v169
    %v648 = vunpack.c.h.b16 %v169
    %v649 = vunpack.c.l.b16 %v170
    %v650 = vunpack.c.h.b16 %v170
    %v651 = vunpack.c.l.b16 %v171
    %v652 = vunpack.c.h.b16 %v171
    %v653 = vunpack.c.l.b16 %v172
    %v654 = vunpack.c.h.b16 %v172
    %v655 = vunpack.c.l.b16 %v173
    %v656 = vunpack.c.h.b16 %v173
    %v657 = vunpack.c.l.b16 %v174
    %v658 = vunpack.c.h.b16 %v174
    %v659 = vunpack.c.l.b16 %v175
    %v660 = vunpack.c.h.b16 %v175
    %v661 = vunpack.c.l.b16 %v176
    %v662 = vunpack.c.h.b16 %v176
    %v663 = vunpack.c.l.b16 %v177
    %v664 = vunpack.c.h.b16 %v177
    %v665 = vunpack.c.l.b16 %v178
    %v666 = vunpack.c.h.b16 %v178
    %v667 = vunpack.c.l.b16 %v179
    %v668 = vunpack.c.h.b16 %v179
    %v669 = vunpack.c.l.b16 %v180
    %v670 = vunpack.c.h.b16 %v180
    %v671 = vunpack.c.l.b16 %v181
    %v672 = vunpack.c.h.b16 %v181
    %v673 = vunpack.c.l.b16 %v182
    %v674 = vunpack.c.h.b16 %v182
    %v675 = vunpack.c.l.b16 %v183
    %v676 = vunpack.c.h.b16 %v183
    %v677 = vunpack.c.l.b16 %v184
    %v678 = vunpack.c.h.b16 %v184
    %v679 = vunpack.c.l.b16 %v185
    %v680 = vunpack.c.h.b16 %v185
    %v681 = vunpack.c.l.b16 %v186
    %v682 = vunpack.c.h.b16 %v186
    %v683 = vunpack.c.l.b16 %v187
    %v684 = vunpack.c.h.b16 %v187
    %v685 = vunpack.c.l.b16 %v188
    %v686 = vunpack.c.h.b16 %v188
    %v687 = vunpack.c.l.b16 %v189
    %v688 = vunpack.c.h.b16 %v189
    %v689 = vunpack.c.l.b16 %v190
    %v690 = vunpack.c.h.b16 %v190
    %v691 = vunpack.c.l.b16 %v191
    %v692 = vunpack.c.h.b16 %v191
    %v693 = vunpack.c.l.b16 %v192
    %v694 = vunpack.c.h.b16 %v192
    %v695 = vunpack.c.l.b16 %v193
    %v696 = vunpack.c.h.b16 %v193
    %v697 = vunpack.c.l.b16 %v194
    %v698 = vunpack.c.h.b16 %v194
    %v699 = vunpack.c.l.b16 %v195
    %v700 = vunpack.c.h.b16 %v195
    %v701 = vunpack.c.l.b16 %v196
    %v702 = vunpack.c.h.b16 %v196
    %v703 = vunpack.c.l.b16 %v197
    %v704 = vunpack.c.h.b16 %v197
    %v705 = vunpack.c.l.b16 %v198
    %v706 = vunpack.c.h.b16 %v198
    %v707 = vunpack.c.l.b16 %v199
    %v708 = vunpack.c.h.b16 %v199
    %v709 = vunpack.c.l.b16 %v200
    %v710 = vunpack.c.h.b16 %v200
    %v711 = vunpack.c.l.b16 %v201
    %v712 = vunpack.c.h.b16 %v201
    %v713 = vunpack.c.l.b16 %v202
    %v714 = vunpack.c.h.b16 %v202
    %v715 = vunpack.c.l.b16 %v203
    %v716 = vunpack.c.h.b16 %v203
    %v717 = vunpack.c.l.b16 %v204
    %v718 = vunpack.c.h.b16 %v204
    %v719 = vunpack.c.l.b16 %v205
    %v720 = vunpack.c.h.b16 %v205
    %v721 = vunpack.c.l.b16 %v206
    %v722 = vunpack.c.h.b16 %v206
    %v723 = vunpack.c.l.b16 %v207
    %v724 = vunpack.c.h.b16 %v207
    %v725 = vunpack.c.l.b16 %v208
    %v726 = vunpack.c.h.b16 %v208
    %v727 = vunpack.c.l.b16 %v209
    %v728 = vunpack.c.h.b16 %v209
    %v729 = vunpack.c.l.b16 %v210
    %v730 = vunpack.c.h.b16 %v210
    %v731 = vunpack.c.l.b16 %v211
    %v732 = vunpack.c.h.b16 %v211
    %v733 = vunpack.c.l.b16 %v212
    %v734 = vunpack.c.h.b16 %v212
    %v735 = vunpack.c.l.b16 %v213
    %v736 = vunpack.c.h.b16 %v213
    %v737 = vunpack.c.l.b16 %v214
    %v738 = vunpack.c.h.b16 %v214
    %v739 = vunpack.c.l.b16 %v215
    %v740 = vunpack.c.h.b16 %v215
    %v741 = vunpack.c.l.b16 %v216
    %v742 = vunpack.c.h.b16 %v216
    %v743 = vunpack.c.l.b16 %v217
    %v744 = vunpack.c.h.b16 %v217
    %v745 = vunpack.c.l.b16 %v218
    %v746 = vunpack.c.h.b16 %v218
    %v747 = vunpack.c.l.b16 %v219
    %v748 = vunpack.c.h.b16 %v219
    %v749 = vunpack.c.l.b16 %v220
    %v750 = vunpack.c.h.b16 %v220
    %v751 = vunpack.c.l.b16 %v221
    %v752 = vunpack.c.h.b16 %v221
    %v753 = vunpack.c.l.b16 %v222
    %v754 = vunpack.c.h.b16 %v222
    %v755 = vunpack.c.l.b16 %v223
    %v756 = vunpack.c.h.b16 %v223
    %v757 = vunpack.c.l.b16 %v224
    %v758 = vunpack.c.h.b16 %v224
    %v759 = vunpack.c.l.b16 %v225
    %v760 = vunpack.c.h.b16 %v225
    %v761 = vunpack.c.l.b16 %v226
    %v762 = vunpack.c.h.b16 %v226
    %v763 = vunpack.c.l.b16 %v227
    %v764 = vunpack.c.h.b16 %v227
    %v765 = vunpack.c.l.b16 %v228
    %v766 = vunpack.c.h.b16 %v228
    %v767 = vunpack.c.l.b16 %v229
    %v768 = vunpack.c.h.b16 %v229
    %v769 = vunpack.c.l.b16 %v230
    %v770 = vunpack.c.h.b16 %v230
    %v771 = vunpack.c.l.b16 %v231
    %v772 = vunpack.c.h.b16 %v231
    %v773 = vunpack.c.l.b16 %v232
    %v774 = vunpack.c.h.b16 %v232
    %v775 = vunpack.c.l.b16 %v233
    %v776 = vunpack.c.h.b16 %v233
    %v777 = vunpack.c.l.b16 %v234
    %v778 = vunpack.c.h.b16 %v234
    %v779 = vunpack.c.l.b16 %v235
    %v780 = vunpack.c.h.b16 %v235
    %v781 = vunpack.c.l.b16 %v236
    %v782 = vunpack.c.h.b16 %v236
    %v783 = vunpack.c.l.b16 %v237
    %v784 = vunpack.c.h.b16 %v237
    %v785 = vunpack.c.l.b16 %v238
    %v786 = vunpack.c.h.b16 %v238
    %v787 = vunpack.c.l.b16 %v239
    %v788 = vunpack.c.h.b16 %v239
    %v789 = vunpack.c.l.b16 %v240
    %v790 = vunpack.c.h.b16 %v240
    %v791 = vunpack.c.l.b16 %v241
    %v792 = vunpack.c.h.b16 %v241
    %v793 = vunpack.c.l.b16 %v242
    %v794 = vunpack.c.h.b16 %v242
    %v795 = vunpack.c.l.b16 %v243
    %v796 = vunpack.c.h.b16 %v243
    %v797 = vunpack.c.l.b16 %v244
    %v798 = vunpack.c.h.b16 %v244
    %v799 = vunpack.c.l.b16 %v245
    %v800 = vunpack.c.h.b16 %v245
    %v801 = vunpack.c.l.b16 %v246
    %v802 = vunpack.c.h.b16 %v246
    %v803 = vunpack.c.l.b16 %v247
    %v804 = vunpack.c.h.b16 %v247
    %v805 = vunpack.c.l.b16 %v248
    %v806 = vunpack.c.h.b16 %v248
    %v807 = vunpack.c.l.b16 %v249
    %v808 = vunpack.c.h.b16 %v249
    %v809 = vunpack.c.l.b16 %v250
    %v810 = vunpack.c.h.b16 %v250
    %v811 = vunpack.c.l.b16 %v251
    %v812 = vunpack.c.h.b16 %v251
    %v813 = vunpack.c.l.b16 %v252
    %v814 = vunpack.c.h.b16 %v252
    %v815 = vunpack.c.l.b16 %v253
    %v816 = vunpack.c.h.b16 %v253
    %v817 = vunpack.c.l.b16 %v254
    %v818 = vunpack.c.h.b16 %v254
    %v819 = vunpack.c.l.b16 %v255
    %v820 = vunpack.c.h.b16 %v255
    %v821 = vunpack.c.l.b16 %v256
    %v822 = vunpack.c.h.b16 %v256
    %v823 = vunpack.c.l.b16 %v257
    %v824 = vunpack.c.h.b16 %v257
    %v825 = vunpack.c.l.b16 %v258
    %v826 = vunpack.c.h.b16 %v258
    %v827 = vunpack.c.l.b16 %v259
    %v828 = vunpack.c.h.b16 %v259
    %v829 = vunpack.c.l.b16 %v260
    %v830 = vunpack.c.h.b16 %v260
    %v831 = vunpack.c.l.b16 %v261
    %v832 = vunpack.c.h.b16 %v261
    %v833 = vunpack.c.l.b16 %v262
    %v834 = vunpack.c.h.b16 %v262
    %v835 = vunpack.c.l.b16 %v263
    %v836 = vunpack.c.h.b16 %v263
    %v837 = vunpack.c.l.b16 %v264
    %v838 = vunpack.c.h.b16 %v264
    %v839 = vunpack.c.l.b16 %v265
    %v840 = vunpack.c.h.b16 %v265
    %v841 = vunpack.c.l.b16 %v266
    %v842 = vunpack.c.h.b16 %v266
    %v843 = vunpack.c.l.b16 %v267
    %v844 = vunpack.c.h.b16 %v267
    %v845 = vunpack.c.l.b16 %v268
    %v846 = vunpack.c.h.b16 %v268
    %v847 = vunpack.c.l.b16 %v269
    %v848 = vunpack.c.h.b16 %v269
    %v849 = vunpack.c.l.b16 %v270
    %v850 = vunpack.c.h.b16 %v270
    %v851 = vunpack.c.l.b16 %v271
    %v852 = vunpack.c.h.b16 %v271
    %v853 = vunpack.c.l.b16 %v272
    %v854 = vunpack.c.h.b16 %v272
    %v855 = vunpack.c.l.b16 %v273
    %v856 = vunpack.c.h.b16 %v273
    %v857 = vunpack.c.l.b16 %v274
    %v858 = vunpack.c.h.b16 %v274
    %v859 = vunpack.c.l.b16 %v275
    %v860 = vunpack.c.h.b16 %v275
    %v861 = vunpack.c.l.b16 %v276
    %v862 = vunpack.c.h.b16 %v276
    %v863 = vpack.c.b16 %v483, %v479
    %v864 = vpack.c.b16 %v484, %v480
    %v865 = vpack.c.b16 %v485, %v481
    %v866 = vpack.c.b16 %v486, %v482
    %v867 = vpack.c.b16 %v491, %v487
    %v868 = vpack.c.b16 %v492, %v488
    %v869 = vpack.c.b16 %v493, %v489
    %v870 = vpack.c.b16 %v494, %v490
    %v871 = vpack.c.b16 %v499, %v495
    %v872 = vpack.c.b16 %v500, %v496
    %v873 = vpack.c.b16 %v501, %v497
    %v874 = vpack.c.b16 %v502, %v498
    %v875 = vpack.c.b16 %v507, %v503
    %v876 = vpack.c.b16 %v508, %v504
    %v877 = vpack.c.b16 %v509, %v505
    %v878 = vpack.c.b16 %v510, %v506
    %v879 = vpack.c.b16 %v515, %v511
    %v880 = vpack.c.b16 %v516, %v512
    %v881 = vpack.c.b16 %v517, %v513
    %v882 = vpack.c.b16 %v518, %v514
    %v883 = vpack.c.b16 %v523, %v519
    %v884 = vpack.c.b16 %v524, %v520
    %v885 = vpack.c.b16 %v525, %v521
    %v886 = vpack.c.b16 %v526, %v522
    %v887 = vpack.c.b16 %v531, %v527
    %v888 = vpack.c.b16 %v532, %v528
    %v889 = vpack.c.b16 %v533, %v529
    %v890 = vpack.c.b16 %v534, %v530
    %v891 = vpack.c.b16 %v539, %v535
    %v892 = vpack.c.b16 %v540, %v536
    %v893 = vpack.c.b16 %v541, %v537
    %v894 = vpack.c.b16 %v542, %v538
    %v895 = vpack.c.b16 %v547, %v543
    %v896 = vpack.c.b16 %v548, %v544
    %v897 = vpack.c.b16 %v549, %v545
    %v898 = vpack.c.b16 %v550, %v546
    %v899 = vpack.c.b16 %v555, %v551
    %v900 = vpack.c.b16 %v556, %v552
    %v901 = vpack.c.b16 %v557, %v553
    %v902 = vpack.c.b16 %v558, %v554
    %v903 = vpack.c.b16 %v563, %v559
    %v904 = vpack.c.b16 %v564, %v560
    %v905 = vpack.c.b16 %v565, %v561
    %v906 = vpack.c.b16 %v566, %v562
    %v907 = vpack.c.b16 %v571, %v567
    %v908 = vpack.c.b16 %v572, %v568
    %v909 = vpack.c.b16 %v573, %v569
    %v910 = vpack.c.b16 %v574, %v570
    %v911 = vpack.c.b16 %v579, %v575
    %v912 = vpack.c.b16 %v580, %v576
    %v913 = vpack.c.b16 %v581, %v577
    %v914 = vpack.c.b16 %v582, %v578
    %v915 = vpack.c.b16 %v587, %v583
    %v916 = vpack.c.b16 %v588, %v584
    %v917 = vpack.c.b16 %v589, %v585
    %v918 = vpack.c.b16 %v590, %v586
    %v919 = vpack.c.b16 %v595, %v591
    %v920 = vpack.c.b16 %v596, %v592
    %v921 = vpack.c.b16 %v597, %v593
    %v922 = vpack.c.b16 %v598, %v594
    %v923 = vpack.c.b16 %v603, %v599
    %v924 = vpack.c.b16 %v604, %v600
    %v925 = vpack.c.b16 %v605, %v601
    %v926 = vpack.c.b16 %v606, %v602
    %v927 = vpack.c.b16 %v611, %v607
    %v928 = vpack.c.b16 %v612, %v608
    %v929 = vpack.c.b16 %v613, %v609
    %v930 = vpack.c.b16 %v614, %v610
    %v931 = vpack.c.b16 %v619, %v615
    %v932 = vpack.c.b16 %v620, %v616
    %v933 = vpack.c.b16 %v621, %v617
    %v934 = vpack.c.b16 %v622, %v618
    %v935 = vpack.c.b16 %v627, %v623
    %v936 = vpack.c.b16 %v628, %v624
    %v937 = vpack.c.b16 %v629, %v625
    %v938 = vpack.c.b16 %v630, %v626
    %v939 = vpack.c.b16 %v635, %v631
    %v940 = vpack.c.b16 %v636, %v632
    %v941 = vpack.c.b16 %v637, %v633
    %v942 = vpack.c.b16 %v638, %v634
    %v943 = vpack.c.b16 %v643, %v639
    %v944 = vpack.c.b16 %v644, %v640
    %v945 = vpack.c.b16 %v645, %v641
    %v946 = vpack.c.b16 %v646, %v642
    %v947 = vpack.c.b16 %v651, %v647
    %v948 = vpack.c.b16 %v652, %v648
    %v949 = vpack.c.b16 %v653, %v649
    %v950 = vpack.c.b16 %v654, %v650
    %v951 = vpack.c.b16 %v659, %v655
    %v952 = vpack.c.b16 %v660, %v656
    %v953 = vpack.c.b16 %v661, %v657
    %v954 = vpack.c.b16 %v662, %v658
    %v955 = vpack.c.b16 %v667, %v663
    %v956 = vpack.c.b16 %v668, %v664
    %v957 = vpack.c.b16 %v669, %v665
    %v958 = vpack.c.b16 %v670, %v666
    %v959 = vpack.c.b16 %v675, %v671
    %v960 = vpack.c.b16 %v676, %v672
    %v961 = vpack.c.b16 %v677, %v673
    %v962 = vpack.c.b16 %v678, %v674
    %v963 = vpack.c.b16 %v683, %v679
    %v964 = vpack.c.b16 %v684, %v680
    %v965 = vpack.c.b16 %v685, %v681
    %v966 = vpack.c.b16 %v686, %v682
    %v967 = vpack.c.b16 %v691, %v687
    %v968 = vpack.c.b16 %v692, %v688
    %v969 = vpack.c.b16 %v693, %v689
    %v970 = vpack.c.b16 %v694, %v690
    %v971 = vpack.c.b16 %v699, %v695
    %v972 = vpack.c.b16 %v700, %v696
    %v973 = vpack.c.b16 %v701, %v697
    %v974 = vpack.c.b16 %v702, %v698
    %v975 = vpack.c.b16 %v707, %v703
    %v976 = vpack.c.b16 %v708, %v704
    %v977 = vpack.c.b16 %v709, %v705
    %v978 = vpack.c.b16 %v710, %v706
    %v979 = vpack.c.b16 %v715, %v711
    %v980 = vpack.c.b16 %v716, %v712
    %v981 = vpack.c.b16 %v717, %v713
    %v982 = vpack.c.b16 %v718, %v714
    %v983 = vpack.c.b16 %v723, %v719
    %v984 = vpack.c.b16 %v724, %v720
    %v985 = vpack.c.b16 %v725, %v721
    %v986 = vpack.c.b16 %v726, %v722
    %v987 = vpack.c.b16 %v731, %v727
    %v988 = vpack.c.b16 %v732, %v728
    %v989 = vpack.c.b16 %v733, %v729
    %v990 = vpack.c.b16 %v734, %v730
    %v991 = vpack.c.b16 %v739, %v735
    %v992 = vpack.c.b16 %v740, %v736
    %v993 = vpack.c.b16 %v741, %v737
    %v994 = vpack.c.b16 %v742, %v738
    %v995 = vpack.c.b16 %v747, %v743
    %v996 = vpack.c.b16 %v748, %v744
    %v997 = vpack.c.b16 %v749, %v745
    %v998 = vpack.c.b16 %v750, %v746
    %v999 = vpack.c.b16 %v755, %v751
    %v1000 = vpack.c.b16 %v756, %v752
    %v1001 = vpack.c.b16 %v757, %v753
    %v1002 = vpack.c.b16 %v758, %v754
    %v1003 = vpack.c.b16 %v763, %v759
    %v1004 = vpack.c.b16 %v764, %v760
    %v1005 = vpack.c.b16 %v765, %v761
    %v1006 = vpack.c.b16 %v766, %v762
    %v1007 = vpack.c.b16 %v771, %v767
    %v1008 = vpack.c.b16 %v772, %v768
    %v1009 = vpack.c.b16 %v773, %v769
    %v1010 = vpack.c.b16 %v774, %v770
    %v1011 = vpack.c.b16 %v779, %v775
    %v1012 = vpack.c.b16 %v780, %v776
    %v1013 = vpack.c.b16 %v781, %v777
    %v1014 = vpack.c.b16 %v782, %v778
    %v1015 = vpack.c.b16 %v787, %v783
    %v1016 = vpack.c.b16 %v788, %v784
    %v1017 = vpack.c.b16 %v789, %v785
    %v1018 = vpack.c.b16 %v790, %v786
    %v1019 = vpack.c.b16 %v795, %v791
    %v1020 = vpack.c.b16 %v796, %v792
    %v1021 = vpack.c.b16 %v797, %v793
    %v1022 = vpack.c.b16 %v798, %v794
    %v1023 = vpack.c.b16 %v803, %v799
    %v1024 = vpack.c.b16 %v804, %v800
    %v1025 = vpack.c.b16 %v805, %v801
    %v1026 = vpack.c.b16 %v806, %v802
    %v1027 = vpack.c.b16 %v811, %v807
    %v1028 = vpack.c.b16 %v812, %v808
    %v1029 = vpack.c.b16 %v813, %v809
    %v1030 = vpack.c.b16 %v814, %v810
    %v1031 = vpack.c.b16 %v819, %v815
    %v1032 = vpack.c.b16 %v820, %v816
    %v1033 = vpack.c.b16 %v821, %v817
    %v1034 = vpack.c.b16 %v822, %v818
    %v1035 = vpack.c.b16 %v827, %v823
    %v1036 = vpack.c.b16 %v828, %v824
    %v1037 = vpack.c.b16 %v829, %v825
    %v1038 = vpack.c.b16 %v830, %v826
    %v1039 = vpack.c.b16 %v835, %v831
    %v1040 = vpack.c.b16 %v836, %v832
    %v1041 = vpack.c.b16 %v837, %v833
    %v1042 = vpack.c.b16 %v838, %v834
    %v1043 = vpack.c.b16 %v843, %v839
    %v1044 = vpack.c.b16 %v844, %v840
    %v1045 = vpack.c.b16 %v845, %v841
    %v1046 = vpack.c.b16 %v846, %v842
    %v1047 = vpack.c.b16 %v851, %v847
    %v1048 = vpack.c.b16 %v852, %v848
    %v1049 = vpack.c.b16 %v853, %v849
    %v1050 = vpack.c.b16 %v854, %v850
    %v1051 = vpack.c.b16 %v859, %v855
    %v1052 = vpack.c.b16 %v860, %v856
    %v1053 = vpack.c.b16 %v861, %v857
    %v1054 = vpack.c.b16 %v862, %v858
    %1247 = vmatpush.bf16.msra.mxu0 %v891
    %1248 = vmatpush.bf16.msra.mxu0 %v887
    %1249 = vmatpush.bf16.msra.mxu0 %v883
    %1250 = vmatpush.bf16.msra.mxu0 %v879
    %1251 = vmatpush.bf16.msra.mxu0 %v875
    %1252 = vmatpush.bf16.msra.mxu0 %v871
    %1253 = vmatpush.bf16.msra.mxu0 %v867
    %1254 = vmatpush.bf16.msra.mxu0 %v863
    %1255 = vmatmul.bf16.gmra.mxu0 %v79
    %v1256 = vpop.f32.mrf.mxu0
    %v1257 = vadd.f32 %v279, %v1256
    %v1258 = vpop.f32.mrf.mxu0
    %v1259 = vadd.f32 %v279, %v1258
    %1260 = vdwg.mxu0
    %1261 = vmatpush.bf16.msra.mxu0 %v923
    %1262 = vmatpush.bf16.msra.mxu0 %v919
    %1263 = vmatpush.bf16.msra.mxu0 %v915
    %1264 = vmatpush.bf16.msra.mxu0 %v911
    %1265 = vmatpush.bf16.msra.mxu0 %v907
    %1266 = vmatpush.bf16.msra.mxu0 %v903
    %1267 = vmatpush.bf16.msra.mxu0 %v899
    %1268 = vmatpush.bf16.msra.mxu0 %v895
    %1269 = vmatmul.bf16.gmra.mxu0 %v80
    %v1270 = vpop.f32.mrf.mxu0
    %v1271 = vadd.f32 %v1257, %v1270
    %v1272 = vpop.f32.mrf.mxu0
    %v1273 = vadd.f32 %v1259, %v1272
    %1274 = vdwg.mxu0
    %1275 = vmatpush.bf16.msra.mxu0 %v955
    %1276 = vmatpush.bf16.msra.mxu0 %v951
    %1277 = vmatpush.bf16.msra.mxu0 %v947
    %1278 = vmatpush.bf16.msra.mxu0 %v943
    %1279 = vmatpush.bf16.msra.mxu0 %v939
    %1280 = vmatpush.bf16.msra.mxu0 %v935
    %1281 = vmatpush.bf16.msra.mxu0 %v931
    %1282 = vmatpush.bf16.msra.mxu0 %v927
    %1283 = vmatmul.bf16.gmra.mxu0 %v81
    %v1284 = vpop.f32.mrf.mxu0
    %v1285 = vadd.f32 %v1271, %v1284
    %v1286 = vpop.f32.mrf.mxu0
    %v1287 = vadd.f32 %v1273, %v1286
    %1288 = vdwg.mxu0
    %1289 = vmatpush.bf16.msra.mxu0 %v987
    %1290 = vmatpush.bf16.msra.mxu0 %v983
    %1291 = vmatpush.bf16.msra.mxu0 %v979
    %1292 = vmatpush.bf16.msra.mxu0 %v975
    %1293 = vmatpush.bf16.msra.mxu0 %v971
    %1294 = vmatpush.bf16.msra.mxu0 %v967
    %1295 = vmatpush.bf16.msra.mxu0 %v963
    %1296 = vmatpush.bf16.msra.mxu0 %v959
    %1297 = vmatmul.bf16.gmra.mxu0 %v82
    %v1298 = vpop.f32.mrf.mxu0
    %v1299 = vadd.f32 %v1285, %v1298
    %v1300 = vpop.f32.mrf.mxu0
    %v1301 = vadd.f32 %v1287, %v1300
    %1302 = vdwg.mxu0
    %1303 = vmatpush.bf16.msra.mxu0 %v1019
    %1304 = vmatpush.bf16.msra.mxu0 %v1015
    %1305 = vmatpush.bf16.msra.mxu0 %v1011
    %1306 = vmatpush.bf16.msra.mxu0 %v1007
    %1307 = vmatpush.bf16.msra.mxu0 %v1003
    %1308 = vmatpush.bf16.msra.mxu0 %v999
    %1309 = vmatpush.bf16.msra.mxu0 %v995
    %1310 = vmatpush.bf16.msra.mxu0 %v991
    %1311 = vmatmul.bf16.gmra.mxu0 %v83
    %v1312 = vpop.f32.mrf.mxu0
    %v1313 = vadd.f32 %v1299, %v1312
    %v1314 = vpop.f32.mrf.mxu0
    %v1315 = vadd.f32 %v1301, %v1314
    %1316 = vdwg.mxu0
    %1317 = vmatpush.bf16.msra.mxu0 %v1051
    %1318 = vmatpush.bf16.msra.mxu0 %v1047
    %1319 = vmatpush.bf16.msra.mxu0 %v1043
    %1320 = vmatpush.bf16.msra.mxu0 %v1039
    %1321 = vmatpush.bf16.msra.mxu0 %v1035
    %1322 = vmatpush.bf16.msra.mxu0 %v1031
    %1323 = vmatpush.bf16.msra.mxu0 %v1027
    %1324 = vmatpush.bf16.msra.mxu0 %v1023
    %1325 = vmatmul.bf16.gmra.mxu0 %v84
    %v1326 = vpop.f32.mrf.mxu0
    %v1327 = vadd.f32 %v1313, %v1326
    %v1328 = vpop.f32.mrf.mxu0
    %v1329 = vadd.f32 %v1315, %v1328
    %1330 = vdwg.mxu0
    %1331 = vmatpush.bf16.msra.mxu0 %v892
    %1332 = vmatpush.bf16.msra.mxu0 %v888
    %1333 = vmatpush.bf16.msra.mxu0 %v884
    %1334 = vmatpush.bf16.msra.mxu0 %v880
    %1335 = vmatpush.bf16.msra.mxu0 %v876
    %1336 = vmatpush.bf16.msra.mxu0 %v872
    %1337 = vmatpush.bf16.msra.mxu0 %v868
    %1338 = vmatpush.bf16.msra.mxu0 %v864
    %1339 = vmatmul.bf16.gmra.mxu0 %v79
    %v1340 = vpop.f32.mrf.mxu0
    %v1341 = vadd.f32 %v280, %v1340
    %v1342 = vpop.f32.mrf.mxu0
    %v1343 = vadd.f32 %v280, %v1342
    %1344 = vdwg.mxu0
    %1345 = vmatpush.bf16.msra.mxu0 %v924
    %1346 = vmatpush.bf16.msra.mxu0 %v920
    %1347 = vmatpush.bf16.msra.mxu0 %v916
    %1348 = vmatpush.bf16.msra.mxu0 %v912
    %1349 = vmatpush.bf16.msra.mxu0 %v908
    %1350 = vmatpush.bf16.msra.mxu0 %v904
    %1351 = vmatpush.bf16.msra.mxu0 %v900
    %1352 = vmatpush.bf16.msra.mxu0 %v896
    %1353 = vmatmul.bf16.gmra.mxu0 %v80
    %v1354 = vpop.f32.mrf.mxu0
    %v1355 = vadd.f32 %v1341, %v1354
    %v1356 = vpop.f32.mrf.mxu0
    %v1357 = vadd.f32 %v1343, %v1356
    %1358 = vdwg.mxu0
    %1359 = vmatpush.bf16.msra.mxu0 %v956
    %1360 = vmatpush.bf16.msra.mxu0 %v952
    %1361 = vmatpush.bf16.msra.mxu0 %v948
    %1362 = vmatpush.bf16.msra.mxu0 %v944
    %1363 = vmatpush.bf16.msra.mxu0 %v940
    %1364 = vmatpush.bf16.msra.mxu0 %v936
    %1365 = vmatpush.bf16.msra.mxu0 %v932
    %1366 = vmatpush.bf16.msra.mxu0 %v928
    %1367 = vmatmul.bf16.gmra.mxu0 %v81
    %v1368 = vpop.f32.mrf.mxu0
    %v1369 = vadd.f32 %v1355, %v1368
    %v1370 = vpop.f32.mrf.mxu0
    %v1371 = vadd.f32 %v1357, %v1370
    %1372 = vdwg.mxu0
    %1373 = vmatpush.bf16.msra.mxu0 %v988
    %1374 = vmatpush.bf16.msra.mxu0 %v984
    %1375 = vmatpush.bf16.msra.mxu0 %v980
    %1376 = vmatpush.bf16.msra.mxu0 %v976
    %1377 = vmatpush.bf16.msra.mxu0 %v972
    %1378 = vmatpush.bf16.msra.mxu0 %v968
    %1379 = vmatpush.bf16.msra.mxu0 %v964
    %1380 = vmatpush.bf16.msra.mxu0 %v960
    %1381 = vmatmul.bf16.gmra.mxu0 %v82
    %v1382 = vpop.f32.mrf.mxu0
    %v1383 = vadd.f32 %v1369, %v1382
    %v1384 = vpop.f32.mrf.mxu0
    %v1385 = vadd.f32 %v1371, %v1384
    %1386 = vdwg.mxu0
    %1387 = vmatpush.bf16.msra.mxu0 %v1020
    %1388 = vmatpush.bf16.msra.mxu0 %v1016
    %1389 = vmatpush.bf16.msra.mxu0 %v1012
    %1390 = vmatpush.bf16.msra.mxu0 %v1008
    %1391 = vmatpush.bf16.msra.mxu0 %v1004
    %1392 = vmatpush.bf16.msra.mxu0 %v1000
    %1393 = vmatpush.bf16.msra.mxu0 %v996
    %1394 = vmatpush.bf16.msra.mxu0 %v992
    %1395 = vmatmul.bf16.gmra.mxu0 %v83
    %v1396 = vpop.f32.mrf.mxu0
    %v1397 = vadd.f32 %v1383, %v1396
    %v1398 = vpop.f32.mrf.mxu0
    %v1399 = vadd.f32 %v1385, %v1398
    %1400 = vdwg.mxu0
    %1401 = vmatpush.bf16.msra.mxu0 %v1052
    %1402 = vmatpush.bf16.msra.mxu0 %v1048
    %1403 = vmatpush.bf16.msra.mxu0 %v1044
    %1404 = vmatpush.bf16.msra.mxu0 %v1040
    %1405 = vmatpush.bf16.msra.mxu0 %v1036
    %1406 = vmatpush.bf16.msra.mxu0 %v1032
    %1407 = vmatpush.bf16.msra.mxu0 %v1028
    %1408 = vmatpush.bf16.msra.mxu0 %v1024
    %1409 = vmatmul.bf16.gmra.mxu0 %v84
    %v1410 = vpop.f32.mrf.mxu0
    %v1411 = vadd.f32 %v1397, %v1410
    %v1412 = vpop.f32.mrf.mxu0
    %v1413 = vadd.f32 %v1399, %v1412
    %1414 = vdwg.mxu0
    %1415 = vmatpush.bf16.msra.mxu0 %v893
    %1416 = vmatpush.bf16.msra.mxu0 %v889
    %1417 = vmatpush.bf16.msra.mxu0 %v885
    %1418 = vmatpush.bf16.msra.mxu0 %v881
    %1419 = vmatpush.bf16.msra.mxu0 %v877
    %1420 = vmatpush.bf16.msra.mxu0 %v873
    %1421 = vmatpush.bf16.msra.mxu0 %v869
    %1422 = vmatpush.bf16.msra.mxu0 %v865
    %1423 = vmatmul.bf16.gmra.mxu0 %v79
    %v1424 = vpop.f32.mrf.mxu0
    %v1425 = vadd.f32 %v281, %v1424
    %v1426 = vpop.f32.mrf.mxu0
    %v1427 = vadd.f32 %v281, %v1426
    %1428 = vdwg.mxu0
    %1429 = vmatpush.bf16.msra.mxu0 %v925
    %1430 = vmatpush.bf16.msra.mxu0 %v921
    %1431 = vmatpush.bf16.msra.mxu0 %v917
    %1432 = vmatpush.bf16.msra.mxu0 %v913
    %1433 = vmatpush.bf16.msra.mxu0 %v909
    %1434 = vmatpush.bf16.msra.mxu0 %v905
    %1435 = vmatpush.bf16.msra.mxu0 %v901
    %1436 = vmatpush.bf16.msra.mxu0 %v897
    %1437 = vmatmul.bf16.gmra.mxu0 %v80
    %v1438 = vpop.f32.mrf.mxu0
    %v1439 = vadd.f32 %v1425, %v1438
    %v1440 = vpop.f32.mrf.mxu0
    %v1441 = vadd.f32 %v1427, %v1440
    %1442 = vdwg.mxu0
    %1443 = vmatpush.bf16.msra.mxu0 %v957
    %1444 = vmatpush.bf16.msra.mxu0 %v953
    %1445 = vmatpush.bf16.msra.mxu0 %v949
    %1446 = vmatpush.bf16.msra.mxu0 %v945
    %1447 = vmatpush.bf16.msra.mxu0 %v941
    %1448 = vmatpush.bf16.msra.mxu0 %v937
    %1449 = vmatpush.bf16.msra.mxu0 %v933
    %1450 = vmatpush.bf16.msra.mxu0 %v929
    %1451 = vmatmul.bf16.gmra.mxu0 %v81
    %v1452 = vpop.f32.mrf.mxu0
    %v1453 = vadd.f32 %v1439, %v1452
    %v1454 = vpop.f32.mrf.mxu0
    %v1455 = vadd.f32 %v1441, %v1454
    %1456 = vdwg.mxu0
    %1457 = vmatpush.bf16.msra.mxu0 %v989
    %1458 = vmatpush.bf16.msra.mxu0 %v985
    %1459 = vmatpush.bf16.msra.mxu0 %v981
    %1460 = vmatpush.bf16.msra.mxu0 %v977
    %1461 = vmatpush.bf16.msra.mxu0 %v973
    %1462 = vmatpush.bf16.msra.mxu0 %v969
    %1463 = vmatpush.bf16.msra.mxu0 %v965
    %1464 = vmatpush.bf16.msra.mxu0 %v961
    %1465 = vmatmul.bf16.gmra.mxu0 %v82
    %v1466 = vpop.f32.mrf.mxu0
    %v1467 = vadd.f32 %v1453, %v1466
    %v1468 = vpop.f32.mrf.mxu0
    %v1469 = vadd.f32 %v1455, %v1468
    %1470 = vdwg.mxu0
    %1471 = vmatpush.bf16.msra.mxu0 %v1021
    %1472 = vmatpush.bf16.msra.mxu0 %v1017
    %1473 = vmatpush.bf16.msra.mxu0 %v1013
    %1474 = vmatpush.bf16.msra.mxu0 %v1009
    %1475 = vmatpush.bf16.msra.mxu0 %v1005
    %1476 = vmatpush.bf16.msra.mxu0 %v1001
    %1477 = vmatpush.bf16.msra.mxu0 %v997
    %1478 = vmatpush.bf16.msra.mxu0 %v993
    %1479 = vmatmul.bf16.gmra.mxu0 %v83
    %v1480 = vpop.f32.mrf.mxu0
    %v1481 = vadd.f32 %v1467, %v1480
    %v1482 = vpop.f32.mrf.mxu0
    %v1483 = vadd.f32 %v1469, %v1482
    %1484 = vdwg.mxu0
    %1485 = vmatpush.bf16.msra.mxu0 %v1053
    %1486 = vmatpush.bf16.msra.mxu0 %v1049
    %1487 = vmatpush.bf16.msra.mxu0 %v1045
    %1488 = vmatpush.bf16.msra.mxu0 %v1041
    %1489 = vmatpush.bf16.msra.mxu0 %v1037
    %1490 = vmatpush.bf16.msra.mxu0 %v1033
    %1491 = vmatpush.bf16.msra.mxu0 %v1029
    %1492 = vmatpush.bf16.msra.mxu0 %v1025
    %1493 = vmatmul.bf16.gmra.mxu0 %v84
    %v1494 = vpop.f32.mrf.mxu0
    %v1495 = vadd.f32 %v1481, %v1494
    %v1496 = vpop.f32.mrf.mxu0
    %v1497 = vadd.f32 %v1483, %v1496
    %1498 = vdwg.mxu0
    %1499 = vmatpush.bf16.msra.mxu0 %v894
    %1500 = vmatpush.bf16.msra.mxu0 %v890
    %1501 = vmatpush.bf16.msra.mxu0 %v886
    %1502 = vmatpush.bf16.msra.mxu0 %v882
    %1503 = vmatpush.bf16.msra.mxu0 %v878
    %1504 = vmatpush.bf16.msra.mxu0 %v874
    %1505 = vmatpush.bf16.msra.mxu0 %v870
    %1506 = vmatpush.bf16.msra.mxu0 %v866
    %1507 = vmatmul.bf16.gmra.mxu0 %v79
    %v1508 = vpop.f32.mrf.mxu0
    %v1509 = vadd.f32 %v282, %v1508
    %v1510 = vpop.f32.mrf.mxu0
    %v1511 = vadd.f32 %v282, %v1510
    %1512 = vdwg.mxu0
    %1513 = vmatpush.bf16.msra.mxu0 %v926
    %1514 = vmatpush.bf16.msra.mxu0 %v922
    %1515 = vmatpush.bf16.msra.mxu0 %v918
    %1516 = vmatpush.bf16.msra.mxu0 %v914
    %1517 = vmatpush.bf16.msra.mxu0 %v910
    %1518 = vmatpush.bf16.msra.mxu0 %v906
    %1519 = vmatpush.bf16.msra.mxu0 %v902
    %1520 = vmatpush.bf16.msra.mxu0 %v898
    %1521 = vmatmul.bf16.gmra.mxu0 %v80
    %v1522 = vpop.f32.mrf.mxu0
    %v1523 = vadd.f32 %v1509, %v1522
    %v1524 = vpop.f32.mrf.mxu0
    %v1525 = vadd.f32 %v1511, %v1524
    %1526 = vdwg.mxu0
    %1527 = vmatpush.bf16.msra.mxu0 %v958
    %1528 = vmatpush.bf16.msra.mxu0 %v954
    %1529 = vmatpush.bf16.msra.mxu0 %v950
    %1530 = vmatpush.bf16.msra.mxu0 %v946
    %1531 = vmatpush.bf16.msra.mxu0 %v942
    %1532 = vmatpush.bf16.msra.mxu0 %v938
    %1533 = vmatpush.bf16.msra.mxu0 %v934
    %1534 = vmatpush.bf16.msra.mxu0 %v930
    %1535 = vmatmul.bf16.gmra.mxu0 %v81
    %v1536 = vpop.f32.mrf.mxu0
    %v1537 = vadd.f32 %v1523, %v1536
    %v1538 = vpop.f32.mrf.mxu0
    %v1539 = vadd.f32 %v1525, %v1538
    %1540 = vdwg.mxu0
    %1541 = vmatpush.bf16.msra.mxu0 %v990
    %1542 = vmatpush.bf16.msra.mxu0 %v986
    %1543 = vmatpush.bf16.msra.mxu0 %v982
    %1544 = vmatpush.bf16.msra.mxu0 %v978
    %1545 = vmatpush.bf16.msra.mxu0 %v974
    %1546 = vmatpush.bf16.msra.mxu0 %v970
    %1547 = vmatpush.bf16.msra.mxu0 %v966
    %1548 = vmatpush.bf16.msra.mxu0 %v962
    %1549 = vmatmul.bf16.gmra.mxu0 %v82
    %v1550 = vpop.f32.mrf.mxu0
    %v1551 = vadd.f32 %v1537, %v1550
    %v1552 = vpop.f32.mrf.mxu0
    %v1553 = vadd.f32 %v1539, %v1552
    %1554 = vdwg.mxu0
    %1555 = vmatpush.bf16.msra.mxu0 %v1022
    %1556 = vmatpush.bf16.msra.mxu0 %v1018
    %1557 = vmatpush.bf16.msra.mxu0 %v1014
    %1558 = vmatpush.bf16.msra.mxu0 %v1010
    %1559 = vmatpush.bf16.msra.mxu0 %v1006
    %1560 = vmatpush.bf16.msra.mxu0 %v1002
    %1561 = vmatpush.bf16.msra.mxu0 %v998
    %1562 = vmatpush.bf16.msra.mxu0 %v994
    %1563 = vmatmul.bf16.gmra.mxu0 %v83
    %v1564 = vpop.f32.mrf.mxu0
    %v1565 = vadd.f32 %v1551, %v1564
    %v1566 = vpop.f32.mrf.mxu0
    %v1567 = vadd.f32 %v1553, %v1566
    %1568 = vdwg.mxu0
    %1569 = vmatpush.bf16.msra.mxu0 %v1054
    %1570 = vmatpush.bf16.msra.mxu0 %v1050
    %1571 = vmatpush.bf16.msra.mxu0 %v1046
    %1572 = vmatpush.bf16.msra.mxu0 %v1042
    %1573 = vmatpush.bf16.msra.mxu0 %v1038
    %1574 = vmatpush.bf16.msra.mxu0 %v1034
    %1575 = vmatpush.bf16.msra.mxu0 %v1030
    %1576 = vmatpush.bf16.msra.mxu0 %v1026
    %1577 = vmatmul.bf16.gmra.mxu0 %v84
    %v1578 = vpop.f32.mrf.mxu0
    %v1579 = vadd.f32 %v1565, %v1578
    %v1580 = vpop.f32.mrf.mxu0
    %v1581 = vadd.f32 %v1567, %v1580
    %1582 = vdwg.mxu0
    %v1583 = vmax.f32 %v1327, 0.0
    %v1584 = vmax.f32 %v1411, 0.0
    %v1585 = vmax.f32 %v1495, 0.0
    %v1586 = vmax.f32 %v1579, 0.0
    %v1587 = vmax.f32 %v1329, 0.0
    %v1588 = vmax.f32 %v1413, 0.0
    %v1589 = vmax.f32 %v1497, 0.0
    %v1590 = vmax.f32 %v1581, 0.0
    %v1591 = vpack.c.bf16 %v1587, %v1583
    %v1592 = vpack.c.bf16 %v1588, %v1584
    %v1593 = vpack.c.bf16 %v1589, %v1585
    %v1594 = vpack.c.bf16 %v1590, %v1586
    %v1595 = vld [vmem:[#allocation4] sm:$0xff]
    %v1596 = vld [vmem:[#allocation4 + $0x8] sm:$0xff]
    %v1597 = vld [vmem:[#allocation4 + $0x10] sm:$0xff]
    %v1598 = vld [vmem:[#allocation4 + $0x18] sm:$0xff]
    %v1599 = vld [vmem:[#allocation4 + $0x20] sm:$0xff]
    %v1600 = vld [vmem:[#allocation4 + $0x28] sm:$0xff]
    %v1601 = vld [vmem:[#allocation4 + $0x30] sm:$0xff]
    %v1602 = vld [vmem:[#allocation4 + $0x38] sm:$0xff]
    %v1603 = vld [vmem:[#allocation4 + $0x40] sm:$0xff]
    %v1604 = vld [vmem:[#allocation4 + $0x48] sm:$0xff]
    %v1605 = vld [vmem:[#allocation4 + $0x50] sm:$0xff]
    %v1606 = vld [vmem:[#allocation4 + $0x58] sm:$0xff]
    %v1607 = vld [vmem:[#allocation4 + $0x60] sm:$0xff]
    %v1608 = vld [vmem:[#allocation4 + $0x68] sm:$0xff]
    %v1609 = vld [vmem:[#allocation4 + $0x70] sm:$0xff]
    %v1610 = vld [vmem:[#allocation4 + $0x78] sm:$0xff]
    %v1611 = vld [vmem:[#allocation4 + $0x80] sm:$0xff]
    %v1612 = vld [vmem:[#allocation4 + $0x88] sm:$0xff]
    %v1613 = vld [vmem:[#allocation4 + $0x90] sm:$0xff]
    %v1614 = vld [vmem:[#allocation4 + $0x98] sm:$0xff]
    %v1615 = vld [vmem:[#allocation4 + $0xa0] sm:$0xff]
    %v1616 = vld [vmem:[#allocation4 + $0xa8] sm:$0xff]
    %v1617 = vld [vmem:[#allocation4 + $0xb0] sm:$0xff]
    %v1618 = vld [vmem:[#allocation4 + $0xb8] sm:$0xff]
    %v1619 = vld [vmem:[#allocation4 + $0xc0] sm:$0xff]
    %v1620 = vld [vmem:[#allocation4 + $0xc8] sm:$0xff]
    %v1621 = vld [vmem:[#allocation4 + $0xd0] sm:$0xff]
    %v1622 = vld [vmem:[#allocation4 + $0xd8] sm:$0xff]
    %v1623 = vld [vmem:[#allocation4 + $0xe0] sm:$0xff]
    %v1624 = vld [vmem:[#allocation4 + $0xe8] sm:$0xff]
    %v1625 = vld [vmem:[#allocation4 + $0xf0] sm:$0xff]
    %v1626 = vld [vmem:[#allocation4 + $0xf8] sm:$0xff]
    %v1627 = vld [vmem:[#allocation4 + $0x100] sm:$0xff]
    %v1628 = vld [vmem:[#allocation4 + $0x108] sm:$0xff]
    %v1629 = vld [vmem:[#allocation4 + $0x110] sm:$0xff]
    %v1630 = vld [vmem:[#allocation4 + $0x118] sm:$0xff]
    %v1631 = vld [vmem:[#allocation4 + $0x120] sm:$0xff]
    %v1632 = vld [vmem:[#allocation4 + $0x128] sm:$0xff]
    %v1633 = vld [vmem:[#allocation4 + $0x130] sm:$0xff]
    %v1634 = vld [vmem:[#allocation4 + $0x138] sm:$0xff]
    %v1635 = vld [vmem:[#allocation4 + $0x140] sm:$0xff]
    %v1636 = vld [vmem:[#allocation4 + $0x148] sm:$0xff]
    %v1637 = vld [vmem:[#allocation4 + $0x150] sm:$0xff]
    %v1638 = vld [vmem:[#allocation4 + $0x158] sm:$0xff]
    %v1639 = vld [vmem:[#allocation4 + $0x160] sm:$0xff]
    %v1640 = vld [vmem:[#allocation4 + $0x168] sm:$0xff]
    %v1641 = vld [vmem:[#allocation4 + $0x170] sm:$0xff]
    %v1642 = vld [vmem:[#allocation4 + $0x178] sm:$0xff]
    %v1643 = vld [vmem:[#allocation4 + $0x180] sm:$0xff]
    %v1644 = vld [vmem:[#allocation4 + $0x188] sm:$0xff]
    %v1645 = vld [vmem:[#allocation4 + $0x190] sm:$0xff]
    %v1646 = vld [vmem:[#allocation4 + $0x198] sm:$0xff]
    %v1647 = vld [vmem:[#allocation4 + $0x1a0] sm:$0xff]
    %v1648 = vld [vmem:[#allocation4 + $0x1a8] sm:$0xff]
    %v1649 = vld [vmem:[#allocation4 + $0x1b0] sm:$0xff]
    %v1650 = vld [vmem:[#allocation4 + $0x1b8] sm:$0xff]
    %v1651 = vld [vmem:[#allocation4 + $0x1c0] sm:$0xff]
    %v1652 = vld [vmem:[#allocation4 + $0x1c8] sm:$0xff]
    %v1653 = vld [vmem:[#allocation4 + $0x1d0] sm:$0xff]
    %v1654 = vld [vmem:[#allocation4 + $0x1d8] sm:$0xff]
    %v1655 = vld [vmem:[#allocation4 + $0x1e0] sm:$0xff]
    %v1656 = vld [vmem:[#allocation4 + $0x1e8] sm:$0xff]
    %v1657 = vld [vmem:[#allocation4 + $0x1f0] sm:$0xff]
    %v1658 = vld [vmem:[#allocation4 + $0x1f8] sm:$0xff]
    %v1659 = vld [vmem:[%s4] sm:$0x3]
    %v1661 = vperm.slane %v1659, 0
    %v1662 = vperm.slane %v1659, 1
    %v1729 = vunpack.c.l.b16 %v1595
    %v1730 = vunpack.c.h.b16 %v1595
    %v1731 = vunpack.c.l.b16 %v1596
    %v1732 = vunpack.c.h.b16 %v1596
    %v1733 = vunpack.c.l.b16 %v1597
    %v1734 = vunpack.c.h.b16 %v1597
    %v1735 = vunpack.c.l.b16 %v1598
    %v1736 = vunpack.c.h.b16 %v1598
    %v1737 = vunpack.c.l.b16 %v1599
    %v1738 = vunpack.c.h.b16 %v1599
    %v1739 = vunpack.c.l.b16 %v1600
    %v1740 = vunpack.c.h.b16 %v1600
    %v1741 = vunpack.c.l.b16 %v1601
    %v1742 = vunpack.c.h.b16 %v1601
    %v1743 = vunpack.c.l.b16 %v1602
    %v1744 = vunpack.c.h.b16 %v1602
    %v1745 = vunpack.c.l.b16 %v1603
    %v1746 = vunpack.c.h.b16 %v1603
    %v1747 = vunpack.c.l.b16 %v1604
    %v1748 = vunpack.c.h.b16 %v1604
    %v1749 = vunpack.c.l.b16 %v1605
    %v1750 = vunpack.c.h.b16 %v1605
    %v1751 = vunpack.c.l.b16 %v1606
    %v1752 = vunpack.c.h.b16 %v1606
    %v1753 = vunpack.c.l.b16 %v1607
    %v1754 = vunpack.c.h.b16 %v1607
    %v1755 = vunpack.c.l.b16 %v1608
    %v1756 = vunpack.c.h.b16 %v1608
    %v1757 = vunpack.c.l.b16 %v1609
    %v1758 = vunpack.c.h.b16 %v1609
    %v1759 = vunpack.c.l.b16 %v1610
    %v1760 = vunpack.c.h.b16 %v1610
    %v1761 = vunpack.c.l.b16 %v1611
    %v1762 = vunpack.c.h.b16 %v1611
    %v1763 = vunpack.c.l.b16 %v1612
    %v1764 = vunpack.c.h.b16 %v1612
    %v1765 = vunpack.c.l.b16 %v1613
    %v1766 = vunpack.c.h.b16 %v1613
    %v1767 = vunpack.c.l.b16 %v1614
    %v1768 = vunpack.c.h.b16 %v1614
    %v1769 = vunpack.c.l.b16 %v1615
    %v1770 = vunpack.c.h.b16 %v1615
    %v1771 = vunpack.c.l.b16 %v1616
    %v1772 = vunpack.c.h.b16 %v1616
    %v1773 = vunpack.c.l.b16 %v1617
    %v1774 = vunpack.c.h.b16 %v1617
    %v1775 = vunpack.c.l.b16 %v1618
    %v1776 = vunpack.c.h.b16 %v1618
    %v1777 = vunpack.c.l.b16 %v1619
    %v1778 = vunpack.c.h.b16 %v1619
    %v1779 = vunpack.c.l.b16 %v1620
    %v1780 = vunpack.c.h.b16 %v1620
    %v1781 = vunpack.c.l.b16 %v1621
    %v1782 = vunpack.c.h.b16 %v1621
    %v1783 = vunpack.c.l.b16 %v1622
    %v1784 = vunpack.c.h.b16 %v1622
    %v1785 = vunpack.c.l.b16 %v1623
    %v1786 = vunpack.c.h.b16 %v1623
    %v1787 = vunpack.c.l.b16 %v1624
    %v1788 = vunpack.c.h.b16 %v1624
    %v1789 = vunpack.c.l.b16 %v1625
    %v1790 = vunpack.c.h.b16 %v1625
    %v1791 = vunpack.c.l.b16 %v1626
    %v1792 = vunpack.c.h.b16 %v1626
    %v1793 = vunpack.c.l.b16 %v1627
    %v1794 = vunpack.c.h.b16 %v1627
    %v1795 = vunpack.c.l.b16 %v1628
    %v1796 = vunpack.c.h.b16 %v1628
    %v1797 = vunpack.c.l.b16 %v1629
    %v1798 = vunpack.c.h.b16 %v1629
    %v1799 = vunpack.c.l.b16 %v1630
    %v1800 = vunpack.c.h.b16 %v1630
    %v1801 = vunpack.c.l.b16 %v1631
    %v1802 = vunpack.c.h.b16 %v1631
    %v1803 = vunpack.c.l.b16 %v1632
    %v1804 = vunpack.c.h.b16 %v1632
    %v1805 = vunpack.c.l.b16 %v1633
    %v1806 = vunpack.c.h.b16 %v1633
    %v1807 = vunpack.c.l.b16 %v1634
    %v1808 = vunpack.c.h.b16 %v1634
    %v1809 = vunpack.c.l.b16 %v1635
    %v1810 = vunpack.c.h.b16 %v1635
    %v1811 = vunpack.c.l.b16 %v1636
    %v1812 = vunpack.c.h.b16 %v1636
    %v1813 = vunpack.c.l.b16 %v1637
    %v1814 = vunpack.c.h.b16 %v1637
    %v1815 = vunpack.c.l.b16 %v1638
    %v1816 = vunpack.c.h.b16 %v1638
    %v1817 = vunpack.c.l.b16 %v1639
    %v1818 = vunpack.c.h.b16 %v1639
    %v1819 = vunpack.c.l.b16 %v1640
    %v1820 = vunpack.c.h.b16 %v1640
    %v1821 = vunpack.c.l.b16 %v1641
    %v1822 = vunpack.c.h.b16 %v1641
    %v1823 = vunpack.c.l.b16 %v1642
    %v1824 = vunpack.c.h.b16 %v1642
    %v1825 = vunpack.c.l.b16 %v1643
    %v1826 = vunpack.c.h.b16 %v1643
    %v1827 = vunpack.c.l.b16 %v1644
    %v1828 = vunpack.c.h.b16 %v1644
    %v1829 = vunpack.c.l.b16 %v1645
    %v1830 = vunpack.c.h.b16 %v1645
    %v1831 = vunpack.c.l.b16 %v1646
    %v1832 = vunpack.c.h.b16 %v1646
    %v1833 = vunpack.c.l.b16 %v1647
    %v1834 = vunpack.c.h.b16 %v1647
    %v1835 = vunpack.c.l.b16 %v1648
    %v1836 = vunpack.c.h.b16 %v1648
    %v1837 = vunpack.c.l.b16 %v1649
    %v1838 = vunpack.c.h.b16 %v1649
    %v1839 = vunpack.c.l.b16 %v1650
    %v1840 = vunpack.c.h.b16 %v1650
    %v1841 = vunpack.c.l.b16 %v1651
    %v1842 = vunpack.c.h.b16 %v1651
    %v1843 = vunpack.c.l.b16 %v1652
    %v1844 = vunpack.c.h.b16 %v1652
    %v1845 = vunpack.c.l.b16 %v1653
    %v1846 = vunpack.c.h.b16 %v1653
    %v1847 = vunpack.c.l.b16 %v1654
    %v1848 = vunpack.c.h.b16 %v1654
    %v1849 = vunpack.c.l.b16 %v1655
    %v1850 = vunpack.c.h.b16 %v1655
    %v1851 = vunpack.c.l.b16 %v1656
    %v1852 = vunpack.c.h.b16 %v1656
    %v1853 = vunpack.c.l.b16 %v1657
    %v1854 = vunpack.c.h.b16 %v1657
    %v1855 = vunpack.c.l.b16 %v1658
    %v1856 = vunpack.c.h.b16 %v1658
    %v1857 = vpack.c.b16 %v1731, %v1729
    %v1858 = vpack.c.b16 %v1732, %v1730
    %v1859 = vpack.c.b16 %v1735, %v1733
    %v1860 = vpack.c.b16 %v1736, %v1734
    %v1861 = vpack.c.b16 %v1739, %v1737
    %v1862 = vpack.c.b16 %v1740, %v1738
    %v1863 = vpack.c.b16 %v1743, %v1741
    %v1864 = vpack.c.b16 %v1744, %v1742
    %v1865 = vpack.c.b16 %v1747, %v1745
    %v1866 = vpack.c.b16 %v1748, %v1746
    %v1867 = vpack.c.b16 %v1751, %v1749
    %v1868 = vpack.c.b16 %v1752, %v1750
    %v1869 = vpack.c.b16 %v1755, %v1753
    %v1870 = vpack.c.b16 %v1756, %v1754
    %v1871 = vpack.c.b16 %v1759, %v1757
    %v1872 = vpack.c.b16 %v1760, %v1758
    %v1873 = vpack.c.b16 %v1763, %v1761
    %v1874 = vpack.c.b16 %v1764, %v1762
    %v1875 = vpack.c.b16 %v1767, %v1765
    %v1876 = vpack.c.b16 %v1768, %v1766
    %v1877 = vpack.c.b16 %v1771, %v1769
    %v1878 = vpack.c.b16 %v1772, %v1770
    %v1879 = vpack.c.b16 %v1775, %v1773
    %v1880 = vpack.c.b16 %v1776, %v1774
    %v1881 = vpack.c.b16 %v1779, %v1777
    %v1882 = vpack.c.b16 %v1780, %v1778
    %v1883 = vpack.c.b16 %v1783, %v1781
    %v1884 = vpack.c.b16 %v1784, %v1782
    %v1885 = vpack.c.b16 %v1787, %v1785
    %v1886 = vpack.c.b16 %v1788, %v1786
    %v1887 = vpack.c.b16 %v1791, %v1789
    %v1888 = vpack.c.b16 %v1792, %v1790
    %v1889 = vpack.c.b16 %v1795, %v1793
    %v1890 = vpack.c.b16 %v1796, %v1794
    %v1891 = vpack.c.b16 %v1799, %v1797
    %v1892 = vpack.c.b16 %v1800, %v1798
    %v1893 = vpack.c.b16 %v1803, %v1801
    %v1894 = vpack.c.b16 %v1804, %v1802
    %v1895 = vpack.c.b16 %v1807, %v1805
    %v1896 = vpack.c.b16 %v1808, %v1806
    %v1897 = vpack.c.b16 %v1811, %v1809
    %v1898 = vpack.c.b16 %v1812, %v1810
    %v1899 = vpack.c.b16 %v1815, %v1813
    %v1900 = vpack.c.b16 %v1816, %v1814
    %v1901 = vpack.c.b16 %v1819, %v1817
    %v1902 = vpack.c.b16 %v1820, %v1818
    %v1903 = vpack.c.b16 %v1823, %v1821
    %v1904 = vpack.c.b16 %v1824, %v1822
    %v1905 = vpack.c.b16 %v1827, %v1825
    %v1906 = vpack.c.b16 %v1828, %v1826
    %v1907 = vpack.c.b16 %v1831, %v1829
    %v1908 = vpack.c.b16 %v1832, %v1830
    %v1909 = vpack.c.b16 %v1835, %v1833
    %v1910 = vpack.c.b16 %v1836, %v1834
    %v1911 = vpack.c.b16 %v1839, %v1837
    %v1912 = vpack.c.b16 %v1840, %v1838
    %v1913 = vpack.c.b16 %v1843, %v1841
    %v1914 = vpack.c.b16 %v1844, %v1842
    %v1915 = vpack.c.b16 %v1847, %v1845
    %v1916 = vpack.c.b16 %v1848, %v1846
    %v1917 = vpack.c.b16 %v1851, %v1849
    %v1918 = vpack.c.b16 %v1852, %v1850
    %v1919 = vpack.c.b16 %v1855, %v1853
    %v1920 = vpack.c.b16 %v1856, %v1854
    %1985 = vmatpush.bf16.msra.mxu0 %v1871
    %1986 = vmatpush.bf16.msra.mxu0 %v1869
    %1987 = vmatpush.bf16.msra.mxu0 %v1867
    %1988 = vmatpush.bf16.msra.mxu0 %v1865
    %1989 = vmatpush.bf16.msra.mxu0 %v1863
    %1990 = vmatpush.bf16.msra.mxu0 %v1861
    %1991 = vmatpush.bf16.msra.mxu0 %v1859
    %1992 = vmatpush.bf16.msra.mxu0 %v1857
    %1993 = vmatmul.bf16.gmra.mxu0 %v1591
    %v1994 = vpop.f32.mrf.mxu0
    %v1995 = vadd.f32 %v1661, %v1994
    %v1996 = vpop.f32.mrf.mxu0
    %v1997 = vadd.f32 %v1661, %v1996
    %1998 = vdwg.mxu0
    %1999 = vmatpush.bf16.msra.mxu0 %v1887
    %2000 = vmatpush.bf16.msra.mxu0 %v1885
    %2001 = vmatpush.bf16.msra.mxu0 %v1883
    %2002 = vmatpush.bf16.msra.mxu0 %v1881
    %2003 = vmatpush.bf16.msra.mxu0 %v1879
    %2004 = vmatpush.bf16.msra.mxu0 %v1877
    %2005 = vmatpush.bf16.msra.mxu0 %v1875
    %2006 = vmatpush.bf16.msra.mxu0 %v1873
    %2007 = vmatmul.bf16.gmra.mxu0 %v1592
    %v2008 = vpop.f32.mrf.mxu0
    %v2009 = vadd.f32 %v1995, %v2008
    %v2010 = vpop.f32.mrf.mxu0
    %v2011 = vadd.f32 %v1997, %v2010
    %2012 = vdwg.mxu0
    %2013 = vmatpush.bf16.msra.mxu0 %v1903
    %2014 = vmatpush.bf16.msra.mxu0 %v1901
    %2015 = vmatpush.bf16.msra.mxu0 %v1899
    %2016 = vmatpush.bf16.msra.mxu0 %v1897
    %2017 = vmatpush.bf16.msra.mxu0 %v1895
    %2018 = vmatpush.bf16.msra.mxu0 %v1893
    %2019 = vmatpush.bf16.msra.mxu0 %v1891
    %2020 = vmatpush.bf16.msra.mxu0 %v1889
    %2021 = vmatmul.bf16.gmra.mxu0 %v1593
    %v2022 = vpop.f32.mrf.mxu0
    %v2023 = vadd.f32 %v2009, %v2022
    %v2024 = vpop.f32.mrf.mxu0
    %v2025 = vadd.f32 %v2011, %v2024
    %2026 = vdwg.mxu0
    %2027 = vmatpush.bf16.msra.mxu0 %v1919
    %2028 = vmatpush.bf16.msra.mxu0 %v1917
    %2029 = vmatpush.bf16.msra.mxu0 %v1915
    %2030 = vmatpush.bf16.msra.mxu0 %v1913
    %2031 = vmatpush.bf16.msra.mxu0 %v1911
    %2032 = vmatpush.bf16.msra.mxu0 %v1909
    %2033 = vmatpush.bf16.msra.mxu0 %v1907
    %2034 = vmatpush.bf16.msra.mxu0 %v1905
    %2035 = vmatmul.bf16.gmra.mxu0 %v1594
    %v2036 = vpop.f32.mrf.mxu0
    %v2037 = vadd.f32 %v2023, %v2036
    %v2038 = vpop.f32.mrf.mxu0
    %v2039 = vadd.f32 %v2025, %v2038
    %2040 = vdwg.mxu0
    %2041 = vmatpush.bf16.msra.mxu0 %v1872
    %2042 = vmatpush.bf16.msra.mxu0 %v1870
    %2043 = vmatpush.bf16.msra.mxu0 %v1868
    %2044 = vmatpush.bf16.msra.mxu0 %v1866
    %2045 = vmatpush.bf16.msra.mxu0 %v1864
    %2046 = vmatpush.bf16.msra.mxu0 %v1862
    %2047 = vmatpush.bf16.msra.mxu0 %v1860
    %2048 = vmatpush.bf16.msra.mxu0 %v1858
    %2049 = vmatmul.bf16.gmra.mxu0 %v1591
    %v2050 = vpop.f32.mrf.mxu0
    %v2051 = vadd.f32 %v1662, %v2050
    %v2052 = vpop.f32.mrf.mxu0
    %v2053 = vadd.f32 %v1662, %v2052
    %2054 = vdwg.mxu0
    %2055 = vmatpush.bf16.msra.mxu0 %v1888
    %2056 = vmatpush.bf16.msra.mxu0 %v1886
    %2057 = vmatpush.bf16.msra.mxu0 %v1884
    %2058 = vmatpush.bf16.msra.mxu0 %v1882
    %2059 = vmatpush.bf16.msra.mxu0 %v1880
    %2060 = vmatpush.bf16.msra.mxu0 %v1878
    %2061 = vmatpush.bf16.msra.mxu0 %v1876
    %2062 = vmatpush.bf16.msra.mxu0 %v1874
    %2063 = vmatmul.bf16.gmra.mxu0 %v1592
    %v2064 = vpop.f32.mrf.mxu0
    %v2065 = vadd.f32 %v2051, %v2064
    %v2066 = vpop.f32.mrf.mxu0
    %v2067 = vadd.f32 %v2053, %v2066
    %2068 = vdwg.mxu0
    %2069 = vmatpush.bf16.msra.mxu0 %v1904
    %2070 = vmatpush.bf16.msra.mxu0 %v1902
    %2071 = vmatpush.bf16.msra.mxu0 %v1900
    %2072 = vmatpush.bf16.msra.mxu0 %v1898
    %2073 = vmatpush.bf16.msra.mxu0 %v1896
    %2074 = vmatpush.bf16.msra.mxu0 %v1894
    %2075 = vmatpush.bf16.msra.mxu0 %v1892
    %2076 = vmatpush.bf16.msra.mxu0 %v1890
    %2077 = vmatmul.bf16.gmra.mxu0 %v1593
    %v2078 = vpop.f32.mrf.mxu0
    %v2079 = vadd.f32 %v2065, %v2078
    %v2080 = vpop.f32.mrf.mxu0
    %v2081 = vadd.f32 %v2067, %v2080
    %2082 = vdwg.mxu0
    %2083 = vmatpush.bf16.msra.mxu0 %v1920
    %2084 = vmatpush.bf16.msra.mxu0 %v1918
    %2085 = vmatpush.bf16.msra.mxu0 %v1916
    %2086 = vmatpush.bf16.msra.mxu0 %v1914
    %2087 = vmatpush.bf16.msra.mxu0 %v1912
    %2088 = vmatpush.bf16.msra.mxu0 %v1910
    %2089 = vmatpush.bf16.msra.mxu0 %v1908
    %2090 = vmatpush.bf16.msra.mxu0 %v1906
    %2091 = vmatmul.bf16.gmra.mxu0 %v1594
    %v2092 = vpop.f32.mrf.mxu0
    %v2093 = vadd.f32 %v2079, %v2092
    %v2094 = vpop.f32.mrf.mxu0
    %v2095 = vadd.f32 %v2081, %v2094
    %2096 = vdwg.mxu0
    %v2097 = vld [vmem:[%s5] sm:$0xf]
    %v2098 = vld [vmem:[%s6] sm:$0xf]
    %2100 = vst [vmem:[#allocation1] ss:$4 sm:$0xff] %v2098
    %v2101 = vld.sshfl [vmem:[#allocation1] sm:$0xff pattern:$0x73625140]
    %v2102 = vld.sshfl [vmem:[#allocation1 + $0x8] sm:$0xff pattern:$0x73625140]
    %2105 = vmatpush.xpose.msra.mxu0 0.0
    %2106 = vmatpush.xpose.msra.mxu0 0.0
    %2107 = vmatpush.xpose.msra.mxu0 0.0
    %2108 = vmatpush.xpose.msra.mxu0 0.0
    %2109 = vmatpush.xpose.msra.mxu0 0.0
    %2110 = vmatpush.xpose.msra.mxu0 0.0
    %2111 = vmatpush.xpose.msra.mxu0 0.0
    %2112 = vmatpush.xpose.msra.mxu0 0.0
    %2113 = vmatpush.xpose.msra.mxu0 0.0
    %2114 = vmatpush.xpose.msra.mxu0 0.0
    %2115 = vmatpush.xpose.msra.mxu0 0.0
    %2116 = vmatpush.xpose.msra.mxu0 0.0
    %2117 = vmatpush.xpose.msra.mxu0 0.0
    %2118 = vmatpush.xpose.msra.mxu0 0.0
    %2119 = vmatpush.xpose.msra.mxu0 0.0
    %2120 = vmatpush.xpose.msra.mxu0 %v2101
    %2121 = vmatmul.f32.gmra.mxu0 %v2039
    %v2122 = vpop.f32.mrf.mxu0
    %v2123 = vadd.f32 0.0, %v2122
    %2124 = vdwg.mxu0
    %2125 = vmatpush.xpose.msra.mxu0 0.0
    %2126 = vmatpush.xpose.msra.mxu0 0.0
    %2127 = vmatpush.xpose.msra.mxu0 0.0
    %2128 = vmatpush.xpose.msra.mxu0 0.0
    %2129 = vmatpush.xpose.msra.mxu0 0.0
    %2130 = vmatpush.xpose.msra.mxu0 0.0
    %2131 = vmatpush.xpose.msra.mxu0 0.0
    %2132 = vmatpush.xpose.msra.mxu0 0.0
    %2133 = vmatpush.xpose.msra.mxu0 0.0
    %2134 = vmatpush.xpose.msra.mxu0 0.0
    %2135 = vmatpush.xpose.msra.mxu0 0.0
    %2136 = vmatpush.xpose.msra.mxu0 0.0
    %2137 = vmatpush.xpose.msra.mxu0 0.0
    %2138 = vmatpush.xpose.msra.mxu0 0.0
    %2139 = vmatpush.xpose.msra.mxu0 0.0
    %2140 = vmatpush.xpose.msra.mxu0 %v2102
    %2141 = vmatmul.f32.gmra.mxu0 %v2095
    %v2142 = vpop.f32.mrf.mxu0
    %v2143 = vadd.f32 %v2123, %v2142
    %2144 = vdwg.mxu0
    %2146 = vst [vmem:[#allocation1] ss:$4 sm:$0xff] %v2097
    %v2147 = vld.sshfl [vmem:[#allocation1] sm:$0xff pattern:$0x73625140]
    %v2148 = vld.sshfl [vmem:[#allocation1 + $0x8] sm:$0xff pattern:$0x73625140]
    %2151 = vmatpush.xpose.msra.mxu0 0.0
    %2152 = vmatpush.xpose.msra.mxu0 0.0
    %2153 = vmatpush.xpose.msra.mxu0 0.0
    %2154 = vmatpush.xpose.msra.mxu0 0.0
    %2155 = vmatpush.xpose.msra.mxu0 0.0
    %2156 = vmatpush.xpose.msra.mxu0 0.0
    %2157 = vmatpush.xpose.msra.mxu0 0.0
    %2158 = vmatpush.xpose.msra.mxu0 0.0
    %2159 = vmatpush.xpose.msra.mxu0 0.0
    %2160 = vmatpush.xpose.msra.mxu0 0.0
    %2161 = vmatpush.xpose.msra.mxu0 0.0
    %2162 = vmatpush.xpose.msra.mxu0 0.0
    %2163 = vmatpush.xpose.msra.mxu0 0.0
    %2164 = vmatpush.xpose.msra.mxu0 0.0
    %2165 = vmatpush.xpose.msra.mxu0 0.0
    %2166 = vmatpush.xpose.msra.mxu0 %v2147
    %2167 = vmatmul.f32.gmra.mxu0 %v2037
    %v2168 = vpop.f32.mrf.mxu0
    %v2169 = vadd.f32 %v2143, %v2168
    %2170 = vdwg.mxu0
    %2171 = vmatpush.xpose.msra.mxu0 0.0
    %2172 = vmatpush.xpose.msra.mxu0 0.0
    %2173 = vmatpush.xpose.msra.mxu0 0.0
    %2174 = vmatpush.xpose.msra.mxu0 0.0
    %2175 = vmatpush.xpose.msra.mxu0 0.0
    %2176 = vmatpush.xpose.msra.mxu0 0.0
    %2177 = vmatpush.xpose.msra.mxu0 0.0
    %2178 = vmatpush.xpose.msra.mxu0 0.0
    %2179 = vmatpush.xpose.msra.mxu0 0.0
    %2180 = vmatpush.xpose.msra.mxu0 0.0
    %2181 = vmatpush.xpose.msra.mxu0 0.0
    %2182 = vmatpush.xpose.msra.mxu0 0.0
    %2183 = vmatpush.xpose.msra.mxu0 0.0
    %2184 = vmatpush.xpose.msra.mxu0 0.0
    %2185 = vmatpush.xpose.msra.mxu0 0.0
    %2186 = vmatpush.xpose.msra.mxu0 %v2148
    %2187 = vmatmul.f32.gmra.mxu0 %v2093
    %v2188 = vpop.f32.mrf.mxu0
    %v2189 = vadd.f32 %v2169, %v2188
    %2190 = vdwg.mxu0
    %v2191 = vld [vmem:[%s7] sm:$0x1]
    %v2193 = vperm.slane %v2191, 0
    %v2195 = vadd.f32 %v2189, %v2193
    %v2196 = vsub.f32 0.0, %v2195
    %v2197 = vmul.f32 %v2196, 1.442695
    %v2198 = vpow.pop %v2197
    %v2199 = vadd.f32 %v2198, 1.0
    %v2200 = vrcp.pop %v2199
    %2202 = vset.pattern.permute.xlu0 0
    %2203 = vperm.xlu0 %2202, %v2200
    %v2204 = vpop.permute.xlu0 %2203
    %v2206 = vmul.f32 %v2037, %v2204
    %v2207 = vmul.f32 %v2093, %v2204
    %2208 = vset.pattern.permute.xlu0 1
    %2209 = vperm.xlu0 %2208, %v2200
    %v2210 = vpop.permute.xlu0 %2209
    %v2212 = vmul.f32 %v2039, %v2210
    %v2213 = vmul.f32 %v2095, %v2210
    %v2214 = vadd.f32 %v2206, %v2212
    %v2215 = vadd.f32 %v2207, %v2213
    %v2216 = vld [vmem:[%s8] sm:$0xf]
    %v2217 = vld [vmem:[%s9] sm:$0x1]
    %v2219 = vperm.slane %v2217, 0
    %2222 = vst [vmem:[#allocation1] ss:$4 sm:$0xff] %v2216
    %v2223 = vld.sshfl [vmem:[#allocation1] sm:$0xff pattern:$0x73625140]
    %v2224 = vld.sshfl [vmem:[#allocation1 + $0x8] sm:$0xff pattern:$0x73625140]
    %2227 = vmatpush.xpose.msra.mxu0 0.0
    %2228 = vmatpush.xpose.msra.mxu0 0.0
    %2229 = vmatpush.xpose.msra.mxu0 0.0
    %2230 = vmatpush.xpose.msra.mxu0 0.0
    %2231 = vmatpush.xpose.msra.mxu0 0.0
    %2232 = vmatpush.xpose.msra.mxu0 0.0
    %2233 = vmatpush.xpose.msra.mxu0 0.0
    %2234 = vmatpush.xpose.msra.mxu0 0.0
    %2235 = vmatpush.xpose.msra.mxu0 0.0
    %2236 = vmatpush.xpose.msra.mxu0 0.0
    %2237 = vmatpush.xpose.msra.mxu0 0.0
    %2238 = vmatpush.xpose.msra.mxu0 0.0
    %2239 = vmatpush.xpose.msra.mxu0 0.0
    %2240 = vmatpush.xpose.msra.mxu0 0.0
    %2241 = vmatpush.xpose.msra.mxu0 0.0
    %2242 = vmatpush.xpose.msra.mxu0 %v2223
    %2243 = vmatmul.f32.gmra.mxu0 %v2214
    %v2244 = vpop.f32.mrf.mxu0
    %v2245 = vadd.f32 %v2219, %v2244
    %2246 = vdwg.mxu0
    %2247 = vmatpush.xpose.msra.mxu0 0.0
    %2248 = vmatpush.xpose.msra.mxu0 0.0
    %2249 = vmatpush.xpose.msra.mxu0 0.0
    %2250 = vmatpush.xpose.msra.mxu0 0.0
    %2251 = vmatpush.xpose.msra.mxu0 0.0
    %2252 = vmatpush.xpose.msra.mxu0 0.0
    %2253 = vmatpush.xpose.msra.mxu0 0.0
    %2254 = vmatpush.xpose.msra.mxu0 0.0
    %2255 = vmatpush.xpose.msra.mxu0 0.0
    %2256 = vmatpush.xpose.msra.mxu0 0.0
    %2257 = vmatpush.xpose.msra.mxu0 0.0
    %2258 = vmatpush.xpose.msra.mxu0 0.0
    %2259 = vmatpush.xpose.msra.mxu0 0.0
    %2260 = vmatpush.xpose.msra.mxu0 0.0
    %2261 = vmatpush.xpose.msra.mxu0 0.0
    %2262 = vmatpush.xpose.msra.mxu0 %v2224
    %2263 = vmatmul.f32.gmra.mxu0 %v2215
    %v2264 = vpop.f32.mrf.mxu0
    %v2265 = vadd.f32 %v2245, %v2264
    %2266 = vdwg.mxu0
    %vm2267 = vcmask 15360
    %v2268 = vsel %vm2267, %v2265, -inf
    %2269 = vmax.xlane.f32.xlu0 %v2268
    %v2270 = vpop.xlane.xlu0 %2269
    %v2271 = vsub.f32 %v2265, %v2270
    %v2272 = vmul.f32 %v2271, 1.442695
    %v2273 = vpow.pop %v2272
    %v2274 = vsel %vm2267, %v2273, 0.0
    %2275 = vadd.xlane.f32.xlu0 %v2274
    %v2276 = vpop.xlane.xlu0 %2275
    %v2277 = vlog2.pop %v2276
    %v2278 = vmul.f32 %v2277, 0.6931472
    %v2279 = vsub.f32 %v2271, %v2278
    %2280 = vst.msk [vmem:[%s10] sm:$0xff] %vm2267, %v2279
    // Predicated region
    $region50: #{multimodel_sharebackbone_mlp_forward.1} parent=1 // pred_check
      _
    $region51: #{multimodel_sharebackbone_mlp_forward.1} parent=1 // pred_check_branch
      %2282 = sbr.rel (0) target = $region53
    $region52: #{multimodel_sharebackbone_mlp_forward.1} parent=1 // pred_region
      _
    $region53: #{multimodel_sharebackbone_mlp_forward.1} parent=1 // pred_fallthru
      _
    // Predicated region
    $region54: #{multimodel_sharebackbone_mlp_forward.1} parent=1 // pred_check
      _
    $region55: #{multimodel_sharebackbone_mlp_forward.1} parent=1 // pred_check_branch
      %2284 = sbr.rel (0) target = $region57
    $region56: #{multimodel_sharebackbone_mlp_forward.1} parent=1 // pred_region
      _
    $region57: #{multimodel_sharebackbone_mlp_forward.1} parent=1 // pred_fallthru
      _
    %2285 = vsyncpa [#allocation3], 1
    %2286 = vsyncpa [#allocation5], 1

</llo_original>
